<compile_context>
chip_gen: v6e
topology: v6e:2x2x1
jax: 0.10.0
libtpu: 0.0.40
codegen_flags: <defaults>
</compile_context>

<pallas_src>
import functools

import jax
import jax.numpy as jnp
from jax import lax
from jax.experimental import pallas as pl
from jax.experimental.pallas import tpu as pltpu

CODE_LEN = 6
FEATURE_LEN = 6
FINETUNE_DIM = 2
INPUT_LEN = CODE_LEN + FEATURE_LEN + FINETUNE_DIM  # 14
HIDDEN = 40


def _leaky(v):
    # LeakyReLU(negative_slope=0.01)
    return jnp.maximum(v, 0.01 * v)


def deepsdf_kernel(n_valid, xt_ref, w1t_ref, b1_ref, wxall_ref,
                   wh2_ref, cs2_ref, b2_ref,
                   wh3_ref, cs3_ref, b3_ref,
                   wh4_ref, cs4_ref, b4_ref,
                   wh7_ref, cs7_ref, b7_ref,
                   wh5_ref, cs5_ref, b5_ref,
                   w6t_ref, b6_ref,
                   o_ref):
    xt = xt_ref[...]                              # (D_in, N_pad), f32, batch on lanes
    n_pad = xt.shape[1]
    d_in = xt.shape[0]
    hidden = w1t_ref.shape[0]
    d_cat = hidden + d_in
    n_tot = float(n_valid * d_cat)                # true element count for global BN

    mxu_dtype = w1t_ref.dtype                     # f32 or bf16 (wrapper-chosen)
    xt_m = xt.astype(mxu_dtype)

    # Static padding handling: zero out the padded batch columns of h so their
    # contribution to the global sums is exactly 0 (padded x columns are
    # already zero from the wrapper).  No-op (identity) on the aligned path.
    if n_valid < n_pad:
        col = lax.broadcasted_iota(jnp.int32, (1, n_pad), 1)
        lane_mask = (col < n_valid).astype(jnp.float32)
        mask_fn = lambda t: t * lane_mask
    else:
        mask_fn = lambda t: t

    # Layer 1: h = leaky(W1 x + b1)
    h = mask_fn(_leaky(
        jnp.dot(w1t_ref[...], xt_m, preferred_element_type=jnp.float32)
        + b1_ref[...]))

    # Hoisted xb work (xb == x never changes across the 5 cat layers):
    # one fused matmul for all five xb-partial contributions, and the xb
    # moments needed by every layer's global BN statistics.
    xb_all = jnp.dot(wxall_ref[...], xt_m,
                     preferred_element_type=jnp.float32)   # (4H + H/2, N_pad)
    s1_xb = jnp.sum(xt)
    s2_xb = jnp.sum(xt * xt)

    def cat_layer(h, xb_part, wh_ref, cs_ref, b_ref):
        # MXU pass first: independent of the BN statistics, so it can overlap
        # with the XLU reductions below.
        m = jnp.dot(wh_ref[...], h.astype(wh_ref.dtype),
                    preferred_element_type=jnp.float32)
        # Single-pass global statistics over cat([h, xb]) (torch.var unbiased).
        s1 = jnp.sum(h) + s1_xb
        s2 = jnp.sum(h * h) + s2_xb
        mean = s1 / n_tot
        var = (s2 - n_tot * mean * mean) / (n_tot - 1.0)
        inv = lax.rsqrt(var)
        # y = inv*(h@Wh + xb@Wx) + (b - inv*mean*colsum(W))
        shift = b_ref[...] - (inv * mean) * cs_ref[...]
        return mask_fn(_leaky(inv * (m + xb_part) + shift))

    h = cat_layer(h, xb_all[0 * hidden:1 * hidden, :], wh2_ref, cs2_ref, b2_ref)
    h = cat_layer(h, xb_all[1 * hidden:2 * hidden, :], wh3_ref, cs3_ref, b3_ref)
    h = cat_layer(h, xb_all[2 * hidden:3 * hidden, :], wh4_ref, cs4_ref, b4_ref)
    h = cat_layer(h, xb_all[3 * hidden:4 * hidden, :], wh7_ref, cs7_ref, b7_ref)
    h = cat_layer(h, xb_all[4 * hidden:4 * hidden + hidden // 2, :],
                  wh5_ref, cs5_ref, b5_ref)

    # func6: (1, H/2) @ (H/2, N_pad) -> lane-dense (1, N_pad) output
    o_ref[...] = (jnp.dot(w6t_ref[...], h.astype(w6t_ref.dtype),
                          preferred_element_type=jnp.float32) + b6_ref[...])


def prepare_kernel_params(params, mxu_dtype=jnp.float32):
    """Re-layout raw (in, out) params for the feature-major kernel.

    Produces: W1^T, b1, fused Wx_all (all five xb-partial weights, transposed
    and stacked), then per cat-layer (Wh^T, colsum(W), b), then W6^T, b6.
    BN-statistics helpers (colsums, biases) stay f32; matmul weights may be
    cast to bf16 for the MXU on v6e/v7x.
    """
    (w1, b1, w2, b2, w3, b3, w4, b4, w7, b7, w5, b5, w6, b6) = params
    hidden = w1.shape[1]

    cat_ws = [w2, w3, w4, w7, w5]
    cat_bs = [b2, b3, b4, b7, b5]

    w1t = jnp.transpose(w1).astype(mxu_dtype)                    # (H, D_in)
    b1t = jnp.reshape(b1, (-1, 1)).astype(jnp.float32)           # (H, 1)

    wx_all = jnp.concatenate(
        [jnp.transpose(w[hidden:, :]) for w in cat_ws], axis=0
    ).astype(mxu_dtype)                                          # (4H + H/2, D_in)

    per_layer = []
    for w, b in zip(cat_ws, cat_bs):
        per_layer += [
            jnp.transpose(w[:hidden, :]).astype(mxu_dtype),      # Wh^T:   (out, H)
            jnp.reshape(jnp.sum(w, axis=0), (-1, 1)).astype(jnp.float32),  # colsum
            jnp.reshape(b, (-1, 1)).astype(jnp.float32),         # bias:   (out, 1)
        ]

    w6t = jnp.transpose(w6).astype(mxu_dtype)                    # (1, H/2)
    b6t = jnp.reshape(b6, (-1, 1)).astype(jnp.float32)           # (1, 1)

    return [w1t, b1t, wx_all] + per_layer + [w6t, b6t]


def deepsdf_forward(x, params, *, mxu_dtype=jnp.float32):
    n = x.shape[0]
    n_pad = ((n + 127) // 128) * 128                 # lane-align the batch axis

    xt = jnp.transpose(x).astype(jnp.float32)        # (D_in, N): batch on lanes
    if n_pad != n:
        xt = jnp.pad(xt, ((0, 0), (0, n_pad - n)))   # zero-padded columns

    args = [xt] + prepare_kernel_params(params, mxu_dtype)

    out_t = pl.pallas_call(
        functools.partial(deepsdf_kernel, n),
        out_shape=jax.ShapeDtypeStruct((1, n_pad), jnp.float32),
        in_specs=[pl.BlockSpec(memory_space=pltpu.MemorySpace.VMEM)] * len(args),
        out_specs=pl.BlockSpec(memory_space=pltpu.MemorySpace.VMEM),
    )(*args)

    return jnp.transpose(out_t[:, :n])               # (N, 1), matches the module


def make_params(key, hidden=HIDDEN, inp=INPUT_LEN):
    """Deterministic synthetic parameters, stored as (in_features, out_features)."""
    cat_dim = hidden + inp
    shapes = [
        (inp, hidden),           # func1
        (cat_dim, hidden),       # func2
        (cat_dim, hidden),       # func3
        (cat_dim, hidden),       # func4
        (cat_dim, hidden),       # func7
        (cat_dim, hidden // 2),  # func5
        (hidden // 2, 1),        # func6
    ]
    params = []
    for shp in shapes:
        key, kw, kb = jax.random.split(key, 3)
        scale = 1.0 / jnp.sqrt(jnp.float32(shp[0]))
        params.append(jax.random.uniform(kw, shp, jnp.float32, -scale, scale))
        params.append(jax.random.uniform(kb, (1, shp[1]), jnp.float32, -scale, scale))
    return params


def reference_forward(x, params):
    """Plain-JAX reference reproducing the PyTorch forward (for validation)."""
    (w1, b1, w2, b2, w3, b3, w4, b4, w7, b7, w5, b5, w6, b6) = params

    def bn(t):
        m = jnp.mean(t)
        v = jnp.sum((t - m) ** 2) / (t.size - 1)   # torch.var() default: unbiased
        return (t - m) / jnp.sqrt(v)

    xb = x
    h = _leaky(x @ w1 + b1)
    for (w, b) in ((w2, b2), (w3, b3), (w4, b4), (w7, b7), (w5, b5)):
        h = _leaky(bn(jnp.concatenate([h, xb], axis=1)) @ w + b)
    return h @ w6 + b6


if __name__ == "__main__":
    key = jax.random.PRNGKey(0)
    key, kx1, kx2 = jax.random.split(key, 3)
    params = make_params(key)

    # Lane-aligned batch (fast path: no masking emitted at all).
    N1 = 256
    x1 = jax.random.normal(kx1, (N1, INPUT_LEN), jnp.float32)
    ref1 = reference_forward(x1, params)
    out1 = jax.block_until_ready(deepsdf_forward(x1, params))
    assert out1.shape == (N1, 1)
    assert jnp.allclose(out1, ref1, atol=1e-3, rtol=1e-3)

    # Non-lane-aligned batch (exercises the zero-pad + masked-stats path).
    N2 = 200
    x2 = jax.random.normal(kx2, (N2, INPUT_LEN), jnp.float32)
    ref2 = reference_forward(x2, params)
    out2 = jax.block_until_ready(deepsdf_forward(x2, params))
    assert out2.shape == (N2, 1)
    assert jnp.allclose(out2, ref2, atol=1e-3, rtol=1e-3)

    # bf16 MXU operands (recommended on v6e/v7x); BN statistics stay f32.
    out_bf16 = jax.block_until_ready(
        deepsdf_forward(x1, params, mxu_dtype=jnp.bfloat16))
    assert out_bf16.shape == (N1, 1)
    assert bool(jnp.all(jnp.isfinite(out_bf16)))
    assert jnp.allclose(out_bf16, ref1, atol=0.15, rtol=0.15)

    print("KERNEL_OK")
</pallas_src>

<mosaic_0001>
module attributes {stable_mosaic.version = 11 : i64} {
  func.func @deepsdf_kernel(%arg0: memref<14x256xf32, #tpu.memory_space<vmem>>, %arg1: memref<40x14xf32, #tpu.memory_space<vmem>>, %arg2: memref<40x1xf32, #tpu.memory_space<vmem>>, %arg3: memref<180x14xf32, #tpu.memory_space<vmem>>, %arg4: memref<40x40xf32, #tpu.memory_space<vmem>>, %arg5: memref<40x1xf32, #tpu.memory_space<vmem>>, %arg6: memref<40x1xf32, #tpu.memory_space<vmem>>, %arg7: memref<40x40xf32, #tpu.memory_space<vmem>>, %arg8: memref<40x1xf32, #tpu.memory_space<vmem>>, %arg9: memref<40x1xf32, #tpu.memory_space<vmem>>, %arg10: memref<40x40xf32, #tpu.memory_space<vmem>>, %arg11: memref<40x1xf32, #tpu.memory_space<vmem>>, %arg12: memref<40x1xf32, #tpu.memory_space<vmem>>, %arg13: memref<40x40xf32, #tpu.memory_space<vmem>>, %arg14: memref<40x1xf32, #tpu.memory_space<vmem>>, %arg15: memref<40x1xf32, #tpu.memory_space<vmem>>, %arg16: memref<20x40xf32, #tpu.memory_space<vmem>>, %arg17: memref<20x1xf32, #tpu.memory_space<vmem>>, %arg18: memref<20x1xf32, #tpu.memory_space<vmem>>, %arg19: memref<1x20xf32, #tpu.memory_space<vmem>>, %arg20: memref<1x1xf32, #tpu.memory_space<vmem>>, %arg21: memref<1x256xf32, #tpu.memory_space<vmem>>) attributes {dimension_semantics = [], scalar_prefetch = 0 : i64, scratch_operands = 0 : i64, tpu.core_type = #tpu.core_type<tc>} {
    %c0 = arith.constant 0 : index
    %c0_0 = arith.constant 0 : index
    %0 = vector.load %arg0[%c0, %c0_0] : memref<14x256xf32, #tpu.memory_space<vmem>>, vector<14x256xf32>
    %c0_1 = arith.constant 0 : index
    %c0_2 = arith.constant 0 : index
    %1 = vector.load %arg1[%c0_1, %c0_2] : memref<40x14xf32, #tpu.memory_space<vmem>>, vector<40x14xf32>
    %cst = arith.constant dense<0.000000e+00> : vector<40x256xf32>
    %2 = tpu.matmul %1, %0, %cst {dimension_numbers = #tpu.dot_dimension_numbers<[1], [0], [0], [1], [0, 0, 1, 1], [], []>} : vector<40x14xf32>, vector<14x256xf32>, vector<40x256xf32> -> vector<40x256xf32>
    %c0_3 = arith.constant 0 : index
    %c0_4 = arith.constant 0 : index
    %3 = vector.load %arg2[%c0_3, %c0_4] : memref<40x1xf32, #tpu.memory_space<vmem>>, vector<40x1xf32>
    %4 = vector.broadcast %3 : vector<40x1xf32> to vector<40x256xf32>
    %5 = arith.addf %2, %4 : vector<40x256xf32>
    %cst_5 = arith.constant 0.00999999977 : f32
    %6 = vector.broadcast %cst_5 : f32 to vector<40x256xf32>
    %7 = arith.mulf %6, %5 : vector<40x256xf32>
    %8 = arith.maximumf %5, %7 : vector<40x256xf32>
    %c0_6 = arith.constant 0 : index
    %c0_7 = arith.constant 0 : index
    %9 = vector.load %arg3[%c0_6, %c0_7] : memref<180x14xf32, #tpu.memory_space<vmem>>, vector<180x14xf32>
    %cst_8 = arith.constant dense<0.000000e+00> : vector<180x256xf32>
    %10 = tpu.matmul %9, %0, %cst_8 {dimension_numbers = #tpu.dot_dimension_numbers<[1], [0], [0], [1], [0, 0, 1, 1], [], []>} : vector<180x14xf32>, vector<14x256xf32>, vector<180x256xf32> -> vector<180x256xf32>
    %11 = vector.shape_cast %0 : vector<14x256xf32> to vector<1x14x256xf32>
    %cst_9 = arith.constant dense<0.000000e+00> : vector<1xf32>
    %12 = vector.multi_reduction <add>, %11, %cst_9 [1, 2] : vector<1x14x256xf32> to vector<1xf32>
    %13 = vector.shape_cast %12 : vector<1xf32> to vector<1x1x1xf32>
    %14 = vector.extract %13[0, 0, 0] : f32 from vector<1x1x1xf32>
    %15 = arith.mulf %0, %0 : vector<14x256xf32>
    %16 = vector.shape_cast %15 : vector<14x256xf32> to vector<1x14x256xf32>
    %cst_10 = arith.constant dense<0.000000e+00> : vector<1xf32>
    %17 = vector.multi_reduction <add>, %16, %cst_10 [1, 2] : vector<1x14x256xf32> to vector<1xf32>
    %18 = vector.shape_cast %17 : vector<1xf32> to vector<1x1x1xf32>
    %19 = vector.extract %18[0, 0, 0] : f32 from vector<1x1x1xf32>
    %20 = vector.extract_strided_slice %10 {offsets = [0, 0], sizes = [40, 256], strides = [1, 1]} : vector<180x256xf32> to vector<40x256xf32>
    %c0_11 = arith.constant 0 : index
    %c0_12 = arith.constant 0 : index
    %21 = vector.load %arg4[%c0_11, %c0_12] : memref<40x40xf32, #tpu.memory_space<vmem>>, vector<40x40xf32>
    %cst_13 = arith.constant dense<0.000000e+00> : vector<40x256xf32>
    %22 = tpu.matmul %21, %8, %cst_13 {dimension_numbers = #tpu.dot_dimension_numbers<[1], [0], [0], [1], [0, 0, 1, 1], [], []>} : vector<40x40xf32>, vector<40x256xf32>, vector<40x256xf32> -> vector<40x256xf32>
    %23 = vector.shape_cast %8 : vector<40x256xf32> to vector<1x40x256xf32>
    %cst_14 = arith.constant dense<0.000000e+00> : vector<1xf32>
    %24 = vector.multi_reduction <add>, %23, %cst_14 [1, 2] : vector<1x40x256xf32> to vector<1xf32>
    %25 = vector.shape_cast %24 : vector<1xf32> to vector<1x1x1xf32>
    %26 = vector.extract %25[0, 0, 0] : f32 from vector<1x1x1xf32>
    %27 = arith.addf %26, %14 : f32
    %28 = arith.mulf %8, %8 : vector<40x256xf32>
    %29 = vector.shape_cast %28 : vector<40x256xf32> to vector<1x40x256xf32>
    %cst_15 = arith.constant dense<0.000000e+00> : vector<1xf32>
    %30 = vector.multi_reduction <add>, %29, %cst_15 [1, 2] : vector<1x40x256xf32> to vector<1xf32>
    %31 = vector.shape_cast %30 : vector<1xf32> to vector<1x1x1xf32>
    %32 = vector.extract %31[0, 0, 0] : f32 from vector<1x1x1xf32>
    %33 = arith.addf %32, %19 : f32
    %cst_16 = arith.constant 1.382400e+04 : f32
    %34 = arith.divf %27, %cst_16 : f32
    %cst_17 = arith.constant 1.382400e+04 : f32
    %35 = arith.mulf %cst_17, %34 : f32
    %36 = arith.mulf %35, %34 : f32
    %37 = arith.subf %33, %36 : f32
    %cst_18 = arith.constant 1.382300e+04 : f32
    %38 = arith.divf %37, %cst_18 : f32
    %39 = math.rsqrt %38 : f32
    %c0_19 = arith.constant 0 : index
    %c0_20 = arith.constant 0 : index
    %40 = vector.load %arg6[%c0_19, %c0_20] : memref<40x1xf32, #tpu.memory_space<vmem>>, vector<40x1xf32>
    %41 = arith.mulf %39, %34 : f32
    %c0_21 = arith.constant 0 : index
    %c0_22 = arith.constant 0 : index
    %42 = vector.load %arg5[%c0_21, %c0_22] : memref<40x1xf32, #tpu.memory_space<vmem>>, vector<40x1xf32>
    %43 = vector.broadcast %41 : f32 to vector<40x1xf32>
    %44 = arith.mulf %43, %42 : vector<40x1xf32>
    %45 = arith.subf %40, %44 : vector<40x1xf32>
    %46 = arith.addf %22, %20 : vector<40x256xf32>
    %47 = vector.broadcast %39 : f32 to vector<40x256xf32>
    %48 = arith.mulf %47, %46 : vector<40x256xf32>
    %49 = vector.broadcast %45 : vector<40x1xf32> to vector<40x256xf32>
    %50 = arith.addf %48, %49 : vector<40x256xf32>
    %cst_23 = arith.constant 0.00999999977 : f32
    %51 = vector.broadcast %cst_23 : f32 to vector<40x256xf32>
    %52 = arith.mulf %51, %50 : vector<40x256xf32>
    %53 = arith.maximumf %50, %52 : vector<40x256xf32>
    %54 = vector.extract_strided_slice %10 {offsets = [40, 0], sizes = [40, 256], strides = [1, 1]} : vector<180x256xf32> to vector<40x256xf32>
    %c0_24 = arith.constant 0 : index
    %c0_25 = arith.constant 0 : index
    %55 = vector.load %arg7[%c0_24, %c0_25] : memref<40x40xf32, #tpu.memory_space<vmem>>, vector<40x40xf32>
    %cst_26 = arith.constant dense<0.000000e+00> : vector<40x256xf32>
    %56 = tpu.matmul %55, %53, %cst_26 {dimension_numbers = #tpu.dot_dimension_numbers<[1], [0], [0], [1], [0, 0, 1, 1], [], []>} : vector<40x40xf32>, vector<40x256xf32>, vector<40x256xf32> -> vector<40x256xf32>
    %57 = vector.shape_cast %53 : vector<40x256xf32> to vector<1x40x256xf32>
    %cst_27 = arith.constant dense<0.000000e+00> : vector<1xf32>
    %58 = vector.multi_reduction <add>, %57, %cst_27 [1, 2] : vector<1x40x256xf32> to vector<1xf32>
    %59 = vector.shape_cast %58 : vector<1xf32> to vector<1x1x1xf32>
    %60 = vector.extract %59[0, 0, 0] : f32 from vector<1x1x1xf32>
    %61 = arith.addf %60, %14 : f32
    %62 = arith.mulf %53, %53 : vector<40x256xf32>
    %63 = vector.shape_cast %62 : vector<40x256xf32> to vector<1x40x256xf32>
    %cst_28 = arith.constant dense<0.000000e+00> : vector<1xf32>
    %64 = vector.multi_reduction <add>, %63, %cst_28 [1, 2] : vector<1x40x256xf32> to vector<1xf32>
    %65 = vector.shape_cast %64 : vector<1xf32> to vector<1x1x1xf32>
    %66 = vector.extract %65[0, 0, 0] : f32 from vector<1x1x1xf32>
    %67 = arith.addf %66, %19 : f32
    %cst_29 = arith.constant 1.382400e+04 : f32
    %68 = arith.divf %61, %cst_29 : f32
    %cst_30 = arith.constant 1.382400e+04 : f32
    %69 = arith.mulf %cst_30, %68 : f32
    %70 = arith.mulf %69, %68 : f32
    %71 = arith.subf %67, %70 : f32
    %cst_31 = arith.constant 1.382300e+04 : f32
    %72 = arith.divf %71, %cst_31 : f32
    %73 = math.rsqrt %72 : f32
    %c0_32 = arith.constant 0 : index
    %c0_33 = arith.constant 0 : index
    %74 = vector.load %arg9[%c0_32, %c0_33] : memref<40x1xf32, #tpu.memory_space<vmem>>, vector<40x1xf32>
    %75 = arith.mulf %73, %68 : f32
    %c0_34 = arith.constant 0 : index
    %c0_35 = arith.constant 0 : index
    %76 = vector.load %arg8[%c0_34, %c0_35] : memref<40x1xf32, #tpu.memory_space<vmem>>, vector<40x1xf32>
    %77 = vector.broadcast %75 : f32 to vector<40x1xf32>
    %78 = arith.mulf %77, %76 : vector<40x1xf32>
    %79 = arith.subf %74, %78 : vector<40x1xf32>
    %80 = arith.addf %56, %54 : vector<40x256xf32>
    %81 = vector.broadcast %73 : f32 to vector<40x256xf32>
    %82 = arith.mulf %81, %80 : vector<40x256xf32>
    %83 = vector.broadcast %79 : vector<40x1xf32> to vector<40x256xf32>
    %84 = arith.addf %82, %83 : vector<40x256xf32>
    %cst_36 = arith.constant 0.00999999977 : f32
    %85 = vector.broadcast %cst_36 : f32 to vector<40x256xf32>
    %86 = arith.mulf %85, %84 : vector<40x256xf32>
    %87 = arith.maximumf %84, %86 : vector<40x256xf32>
    %88 = vector.extract_strided_slice %10 {offsets = [80, 0], sizes = [40, 256], strides = [1, 1]} : vector<180x256xf32> to vector<40x256xf32>
    %c0_37 = arith.constant 0 : index
    %c0_38 = arith.constant 0 : index
    %89 = vector.load %arg10[%c0_37, %c0_38] : memref<40x40xf32, #tpu.memory_space<vmem>>, vector<40x40xf32>
    %cst_39 = arith.constant dense<0.000000e+00> : vector<40x256xf32>
    %90 = tpu.matmul %89, %87, %cst_39 {dimension_numbers = #tpu.dot_dimension_numbers<[1], [0], [0], [1], [0, 0, 1, 1], [], []>} : vector<40x40xf32>, vector<40x256xf32>, vector<40x256xf32> -> vector<40x256xf32>
    %91 = vector.shape_cast %87 : vector<40x256xf32> to vector<1x40x256xf32>
    %cst_40 = arith.constant dense<0.000000e+00> : vector<1xf32>
    %92 = vector.multi_reduction <add>, %91, %cst_40 [1, 2] : vector<1x40x256xf32> to vector<1xf32>
    %93 = vector.shape_cast %92 : vector<1xf32> to vector<1x1x1xf32>
    %94 = vector.extract %93[0, 0, 0] : f32 from vector<1x1x1xf32>
    %95 = arith.addf %94, %14 : f32
    %96 = arith.mulf %87, %87 : vector<40x256xf32>
    %97 = vector.shape_cast %96 : vector<40x256xf32> to vector<1x40x256xf32>
    %cst_41 = arith.constant dense<0.000000e+00> : vector<1xf32>
    %98 = vector.multi_reduction <add>, %97, %cst_41 [1, 2] : vector<1x40x256xf32> to vector<1xf32>
    %99 = vector.shape_cast %98 : vector<1xf32> to vector<1x1x1xf32>
    %100 = vector.extract %99[0, 0, 0] : f32 from vector<1x1x1xf32>
    %101 = arith.addf %100, %19 : f32
    %cst_42 = arith.constant 1.382400e+04 : f32
    %102 = arith.divf %95, %cst_42 : f32
    %cst_43 = arith.constant 1.382400e+04 : f32
    %103 = arith.mulf %cst_43, %102 : f32
    %104 = arith.mulf %103, %102 : f32
    %105 = arith.subf %101, %104 : f32
    %cst_44 = arith.constant 1.382300e+04 : f32
    %106 = arith.divf %105, %cst_44 : f32
    %107 = math.rsqrt %106 : f32
    %c0_45 = arith.constant 0 : index
    %c0_46 = arith.constant 0 : index
    %108 = vector.load %arg12[%c0_45, %c0_46] : memref<40x1xf32, #tpu.memory_space<vmem>>, vector<40x1xf32>
    %109 = arith.mulf %107, %102 : f32
    %c0_47 = arith.constant 0 : index
    %c0_48 = arith.constant 0 : index
    %110 = vector.load %arg11[%c0_47, %c0_48] : memref<40x1xf32, #tpu.memory_space<vmem>>, vector<40x1xf32>
    %111 = vector.broadcast %109 : f32 to vector<40x1xf32>
    %112 = arith.mulf %111, %110 : vector<40x1xf32>
    %113 = arith.subf %108, %112 : vector<40x1xf32>
    %114 = arith.addf %90, %88 : vector<40x256xf32>
    %115 = vector.broadcast %107 : f32 to vector<40x256xf32>
    %116 = arith.mulf %115, %114 : vector<40x256xf32>
    %117 = vector.broadcast %113 : vector<40x1xf32> to vector<40x256xf32>
    %118 = arith.addf %116, %117 : vector<40x256xf32>
    %cst_49 = arith.constant 0.00999999977 : f32
    %119 = vector.broadcast %cst_49 : f32 to vector<40x256xf32>
    %120 = arith.mulf %119, %118 : vector<40x256xf32>
    %121 = arith.maximumf %118, %120 : vector<40x256xf32>
    %122 = vector.extract_strided_slice %10 {offsets = [120, 0], sizes = [40, 256], strides = [1, 1]} : vector<180x256xf32> to vector<40x256xf32>
    %c0_50 = arith.constant 0 : index
    %c0_51 = arith.constant 0 : index
    %123 = vector.load %arg13[%c0_50, %c0_51] : memref<40x40xf32, #tpu.memory_space<vmem>>, vector<40x40xf32>
    %cst_52 = arith.constant dense<0.000000e+00> : vector<40x256xf32>
    %124 = tpu.matmul %123, %121, %cst_52 {dimension_numbers = #tpu.dot_dimension_numbers<[1], [0], [0], [1], [0, 0, 1, 1], [], []>} : vector<40x40xf32>, vector<40x256xf32>, vector<40x256xf32> -> vector<40x256xf32>
    %125 = vector.shape_cast %121 : vector<40x256xf32> to vector<1x40x256xf32>
    %cst_53 = arith.constant dense<0.000000e+00> : vector<1xf32>
    %126 = vector.multi_reduction <add>, %125, %cst_53 [1, 2] : vector<1x40x256xf32> to vector<1xf32>
    %127 = vector.shape_cast %126 : vector<1xf32> to vector<1x1x1xf32>
    %128 = vector.extract %127[0, 0, 0] : f32 from vector<1x1x1xf32>
    %129 = arith.addf %128, %14 : f32
    %130 = arith.mulf %121, %121 : vector<40x256xf32>
    %131 = vector.shape_cast %130 : vector<40x256xf32> to vector<1x40x256xf32>
    %cst_54 = arith.constant dense<0.000000e+00> : vector<1xf32>
    %132 = vector.multi_reduction <add>, %131, %cst_54 [1, 2] : vector<1x40x256xf32> to vector<1xf32>
    %133 = vector.shape_cast %132 : vector<1xf32> to vector<1x1x1xf32>
    %134 = vector.extract %133[0, 0, 0] : f32 from vector<1x1x1xf32>
    %135 = arith.addf %134, %19 : f32
    %cst_55 = arith.constant 1.382400e+04 : f32
    %136 = arith.divf %129, %cst_55 : f32
    %cst_56 = arith.constant 1.382400e+04 : f32
    %137 = arith.mulf %cst_56, %136 : f32
    %138 = arith.mulf %137, %136 : f32
    %139 = arith.subf %135, %138 : f32
    %cst_57 = arith.constant 1.382300e+04 : f32
    %140 = arith.divf %139, %cst_57 : f32
    %141 = math.rsqrt %140 : f32
    %c0_58 = arith.constant 0 : index
    %c0_59 = arith.constant 0 : index
    %142 = vector.load %arg15[%c0_58, %c0_59] : memref<40x1xf32, #tpu.memory_space<vmem>>, vector<40x1xf32>
    %143 = arith.mulf %141, %136 : f32
    %c0_60 = arith.constant 0 : index
    %c0_61 = arith.constant 0 : index
    %144 = vector.load %arg14[%c0_60, %c0_61] : memref<40x1xf32, #tpu.memory_space<vmem>>, vector<40x1xf32>
    %145 = vector.broadcast %143 : f32 to vector<40x1xf32>
    %146 = arith.mulf %145, %144 : vector<40x1xf32>
    %147 = arith.subf %142, %146 : vector<40x1xf32>
    %148 = arith.addf %124, %122 : vector<40x256xf32>
    %149 = vector.broadcast %141 : f32 to vector<40x256xf32>
    %150 = arith.mulf %149, %148 : vector<40x256xf32>
    %151 = vector.broadcast %147 : vector<40x1xf32> to vector<40x256xf32>
    %152 = arith.addf %150, %151 : vector<40x256xf32>
    %cst_62 = arith.constant 0.00999999977 : f32
    %153 = vector.broadcast %cst_62 : f32 to vector<40x256xf32>
    %154 = arith.mulf %153, %152 : vector<40x256xf32>
    %155 = arith.maximumf %152, %154 : vector<40x256xf32>
    %156 = vector.extract_strided_slice %10 {offsets = [160, 0], sizes = [20, 256], strides = [1, 1]} : vector<180x256xf32> to vector<20x256xf32>
    %c0_63 = arith.constant 0 : index
    %c0_64 = arith.constant 0 : index
    %157 = vector.load %arg16[%c0_63, %c0_64] : memref<20x40xf32, #tpu.memory_space<vmem>>, vector<20x40xf32>
    %cst_65 = arith.constant dense<0.000000e+00> : vector<20x256xf32>
    %158 = tpu.matmul %157, %155, %cst_65 {dimension_numbers = #tpu.dot_dimension_numbers<[1], [0], [0], [1], [0, 0, 1, 1], [], []>} : vector<20x40xf32>, vector<40x256xf32>, vector<20x256xf32> -> vector<20x256xf32>
    %159 = vector.shape_cast %155 : vector<40x256xf32> to vector<1x40x256xf32>
    %cst_66 = arith.constant dense<0.000000e+00> : vector<1xf32>
    %160 = vector.multi_reduction <add>, %159, %cst_66 [1, 2] : vector<1x40x256xf32> to vector<1xf32>
    %161 = vector.shape_cast %160 : vector<1xf32> to vector<1x1x1xf32>
    %162 = vector.extract %161[0, 0, 0] : f32 from vector<1x1x1xf32>
    %163 = arith.addf %162, %14 : f32
    %164 = arith.mulf %155, %155 : vector<40x256xf32>
    %165 = vector.shape_cast %164 : vector<40x256xf32> to vector<1x40x256xf32>
    %cst_67 = arith.constant dense<0.000000e+00> : vector<1xf32>
    %166 = vector.multi_reduction <add>, %165, %cst_67 [1, 2] : vector<1x40x256xf32> to vector<1xf32>
    %167 = vector.shape_cast %166 : vector<1xf32> to vector<1x1x1xf32>
    %168 = vector.extract %167[0, 0, 0] : f32 from vector<1x1x1xf32>
    %169 = arith.addf %168, %19 : f32
    %cst_68 = arith.constant 1.382400e+04 : f32
    %170 = arith.divf %163, %cst_68 : f32
    %cst_69 = arith.constant 1.382400e+04 : f32
    %171 = arith.mulf %cst_69, %170 : f32
    %172 = arith.mulf %171, %170 : f32
    %173 = arith.subf %169, %172 : f32
    %cst_70 = arith.constant 1.382300e+04 : f32
    %174 = arith.divf %173, %cst_70 : f32
    %175 = math.rsqrt %174 : f32
    %c0_71 = arith.constant 0 : index
    %c0_72 = arith.constant 0 : index
    %176 = vector.load %arg18[%c0_71, %c0_72] : memref<20x1xf32, #tpu.memory_space<vmem>>, vector<20x1xf32>
    %177 = arith.mulf %175, %170 : f32
    %c0_73 = arith.constant 0 : index
    %c0_74 = arith.constant 0 : index
    %178 = vector.load %arg17[%c0_73, %c0_74] : memref<20x1xf32, #tpu.memory_space<vmem>>, vector<20x1xf32>
    %179 = vector.broadcast %177 : f32 to vector<20x1xf32>
    %180 = arith.mulf %179, %178 : vector<20x1xf32>
    %181 = arith.subf %176, %180 : vector<20x1xf32>
    %182 = arith.addf %158, %156 : vector<20x256xf32>
    %183 = vector.broadcast %175 : f32 to vector<20x256xf32>
    %184 = arith.mulf %183, %182 : vector<20x256xf32>
    %185 = vector.broadcast %181 : vector<20x1xf32> to vector<20x256xf32>
    %186 = arith.addf %184, %185 : vector<20x256xf32>
    %cst_75 = arith.constant 0.00999999977 : f32
    %187 = vector.broadcast %cst_75 : f32 to vector<20x256xf32>
    %188 = arith.mulf %187, %186 : vector<20x256xf32>
    %189 = arith.maximumf %186, %188 : vector<20x256xf32>
    %c0_76 = arith.constant 0 : index
    %c0_77 = arith.constant 0 : index
    %190 = vector.load %arg19[%c0_76, %c0_77] : memref<1x20xf32, #tpu.memory_space<vmem>>, vector<1x20xf32>
    %cst_78 = arith.constant dense<0.000000e+00> : vector<1x256xf32>
    %191 = tpu.matmul %190, %189, %cst_78 {dimension_numbers = #tpu.dot_dimension_numbers<[1], [0], [0], [1], [0, 0, 1, 1], [], []>} : vector<1x20xf32>, vector<20x256xf32>, vector<1x256xf32> -> vector<1x256xf32>
    %c0_79 = arith.constant 0 : index
    %c0_80 = arith.constant 0 : index
    %192 = vector.load %arg20[%c0_79, %c0_80] : memref<1x1xf32, #tpu.memory_space<vmem>>, vector<1x1xf32>
    %193 = vector.broadcast %192 : vector<1x1xf32> to vector<1x256xf32>
    %194 = arith.addf %191, %193 : vector<1x256xf32>
    %c0_81 = arith.constant 0 : index
    %c0_82 = arith.constant 0 : index
    %195 = vector.load %arg21[%c0_81, %c0_82] : memref<1x256xf32, #tpu.memory_space<vmem>>, vector<1x256xf32>
    tpu.vector_store %arg21[%c0_81, %c0_82], %194 {strides = array<i32>} : memref<1x256xf32, #tpu.memory_space<vmem>>, vector<1x256xf32>,
    return
  }
}

</mosaic_0001>

<llo_original>
// kernel: tpu_custom_call.1
$region0: #{tpu_custom_call.1}
  #allocation0 [shape = 'u32[]', space=smem, size = 0x4, offset = 0x4, fixed_abs, tag = 'smem constant byte address 0x4 - core index']
  #allocation1 [shape = 'u32[144,128]{1,0:T(1,128)}', space=vmem, size = 0x12000, scoped, tag = 'internal scratch']
  #allocation2 [shape = 'f32[1,1]{1,0:T(1,128)S(1)}', space=vmem, size = 0x200, scoped, tag = 'scoped memory for tpu_custom_call.1']
  %s0 = inlined_call_operand.vmem [shape: f32[14,256], index: 0, kind: input, shape index: {}]
  %s1 = inlined_call_operand.vmem [shape: f32[40,14], index: 1, kind: input, shape index: {}]
  %s2 = inlined_call_operand.vmem [shape: f32[40,1], index: 2, kind: input, shape index: {}]
  %s3 = inlined_call_operand.vmem [shape: f32[180,14], index: 3, kind: input, shape index: {}]
  %s4 = inlined_call_operand.vmem [shape: f32[40,40], index: 4, kind: input, shape index: {}]
  %s5 = inlined_call_operand.vmem [shape: f32[40,1], index: 5, kind: input, shape index: {}]
  %s6 = inlined_call_operand.vmem [shape: f32[40,1], index: 6, kind: input, shape index: {}]
  %s7 = inlined_call_operand.vmem [shape: f32[40,40], index: 7, kind: input, shape index: {}]
  %s8 = inlined_call_operand.vmem [shape: f32[40,1], index: 8, kind: input, shape index: {}]
  %s9 = inlined_call_operand.vmem [shape: f32[40,1], index: 9, kind: input, shape index: {}]
  %s10 = inlined_call_operand.vmem [shape: f32[40,40], index: 10, kind: input, shape index: {}]
  %s11 = inlined_call_operand.vmem [shape: f32[40,1], index: 11, kind: input, shape index: {}]
  %s12 = inlined_call_operand.vmem [shape: f32[40,1], index: 12, kind: input, shape index: {}]
  %s13 = inlined_call_operand.vmem [shape: f32[40,40], index: 13, kind: input, shape index: {}]
  %s14 = inlined_call_operand.vmem [shape: f32[40,1], index: 14, kind: input, shape index: {}]
  %s15 = inlined_call_operand.vmem [shape: f32[40,1], index: 15, kind: input, shape index: {}]
  %s16 = inlined_call_operand.vmem [shape: f32[20,40], index: 16, kind: input, shape index: {}]
  %s17 = inlined_call_operand.vmem [shape: f32[20,1], index: 17, kind: input, shape index: {}]
  %s18 = inlined_call_operand.vmem [shape: f32[20,1], index: 18, kind: input, shape index: {}]
  %s19 = inlined_call_operand.vmem [shape: f32[1,20], index: 19, kind: input, shape index: {}]
  %s20 = inlined_call_operand.<no memory space> [shape: f32[1,1], index: 20, kind: input, shape index: {}]
  %s21 = inlined_call_operand.hbm [shape: f32[1,256], index: 21, kind: output, shape index: {}]
  %s22 = sld [smem:[#allocation0]]
  $region94: #{tpu_custom_call.1} parent=0
    _
  %s24 = ssub.s32 1, %s22
  %s25 = scalar_select 0, %s24, %s22
  %v26 = vstv %s20
  %27 = vst [vmem:[#allocation2] sm:$0x1] %v26
  $region1: #{tpu_custom_call.1} parent=0
    #allocation3 [shape = 'u8[1024]{0}', space=vmem, size = 0x400, scoped, tag = 'output window, operand 0, single buffered']
    #allocation4 [shape = 's32[1]{0}', space=sflag, size = 0x4, scoped, tag = 'scoped memory for tpu_custom_call.1']
    %28 = vsyncpa [#allocation4], 0
    // Predicated region
    $region2: #{tpu_custom_call.1} parent=1 // pred_check
      _
    $region3: #{tpu_custom_call.1} parent=1 // pred_check_branch
      %30 = sbr.rel (0) target = $region5
    $region4: #{tpu_custom_call.1} parent=1 // pred_region
      _
    $region5: #{tpu_custom_call.1} parent=1 // pred_fallthru
      _
    // Predicated region
    $region6: #{tpu_custom_call.1} parent=1 // pred_check
      _
    $region7: #{tpu_custom_call.1} parent=1 // pred_check_branch
      %32 = sbr.rel (0) target = $region9
    $region8: #{tpu_custom_call.1} parent=1 // pred_region
      _
    $region9: #{tpu_custom_call.1} parent=1 // pred_fallthru
      _
    // Predicated region
    $region10: #{tpu_custom_call.1} parent=1 // pred_check
      _
    $region11: #{tpu_custom_call.1} parent=1 // pred_check_branch
      %34 = sbr.rel (0) target = $region13
    $region12: #{tpu_custom_call.1} parent=1 // pred_region
      _
    $region13: #{tpu_custom_call.1} parent=1 // pred_fallthru
      _
    // Predicated region
    $region14: #{tpu_custom_call.1} parent=1 // pred_check
      _
    $region15: #{tpu_custom_call.1} parent=1 // pred_check_branch
      %36 = sbr.rel (0) target = $region17
    $region16: #{tpu_custom_call.1} parent=1 // pred_region
      _
    $region17: #{tpu_custom_call.1} parent=1 // pred_fallthru
      _
    // Predicated region
    $region18: #{tpu_custom_call.1} parent=1 // pred_check
      _
    $region19: #{tpu_custom_call.1} parent=1 // pred_check_branch
      %38 = sbr.rel (0) target = $region21
    $region20: #{tpu_custom_call.1} parent=1 // pred_region
      _
    $region21: #{tpu_custom_call.1} parent=1 // pred_fallthru
      _
    // Predicated region
    $region22: #{tpu_custom_call.1} parent=1 // pred_check
      _
    $region23: #{tpu_custom_call.1} parent=1 // pred_check_branch
      %40 = sbr.rel (0) target = $region25
    $region24: #{tpu_custom_call.1} parent=1 // pred_region
      _
    $region25: #{tpu_custom_call.1} parent=1 // pred_fallthru
      _
    // Predicated region
    $region26: #{tpu_custom_call.1} parent=1 // pred_check
      _
    $region27: #{tpu_custom_call.1} parent=1 // pred_check_branch
      %42 = sbr.rel (0) target = $region29
    $region28: #{tpu_custom_call.1} parent=1 // pred_region
      _
    $region29: #{tpu_custom_call.1} parent=1 // pred_fallthru
      _
    // Predicated region
    $region30: #{tpu_custom_call.1} parent=1 // pred_check
      _
    $region31: #{tpu_custom_call.1} parent=1 // pred_check_branch
      %44 = sbr.rel (0) target = $region33
    $region32: #{tpu_custom_call.1} parent=1 // pred_region
      _
    $region33: #{tpu_custom_call.1} parent=1 // pred_fallthru
      _
    // Predicated region
    $region34: #{tpu_custom_call.1} parent=1 // pred_check
      _
    $region35: #{tpu_custom_call.1} parent=1 // pred_check_branch
      %46 = sbr.rel (0) target = $region37
    $region36: #{tpu_custom_call.1} parent=1 // pred_region
      _
    $region37: #{tpu_custom_call.1} parent=1 // pred_fallthru
      _
    // Predicated region
    $region38: #{tpu_custom_call.1} parent=1 // pred_check
      _
    $region39: #{tpu_custom_call.1} parent=1 // pred_check_branch
      %48 = sbr.rel (0) target = $region41
    $region40: #{tpu_custom_call.1} parent=1 // pred_region
      _
    $region41: #{tpu_custom_call.1} parent=1 // pred_fallthru
      _
    // Predicated region
    $region42: #{tpu_custom_call.1} parent=1 // pred_check
      _
    $region43: #{tpu_custom_call.1} parent=1 // pred_check_branch
      %50 = sbr.rel (0) target = $region45
    $region44: #{tpu_custom_call.1} parent=1 // pred_region
      _
    $region45: #{tpu_custom_call.1} parent=1 // pred_fallthru
      _
    // Predicated region
    $region46: #{tpu_custom_call.1} parent=1 // pred_check
      _
    $region47: #{tpu_custom_call.1} parent=1 // pred_check_branch
      %52 = sbr.rel (0) target = $region49
    $region48: #{tpu_custom_call.1} parent=1 // pred_region
      _
    $region49: #{tpu_custom_call.1} parent=1 // pred_fallthru
      _
    // Predicated region
    $region50: #{tpu_custom_call.1} parent=1 // pred_check
      _
    $region51: #{tpu_custom_call.1} parent=1 // pred_check_branch
      %54 = sbr.rel (0) target = $region53
    $region52: #{tpu_custom_call.1} parent=1 // pred_region
      _
    $region53: #{tpu_custom_call.1} parent=1 // pred_fallthru
      _
    // Predicated region
    $region54: #{tpu_custom_call.1} parent=1 // pred_check
      _
    $region55: #{tpu_custom_call.1} parent=1 // pred_check_branch
      %56 = sbr.rel (0) target = $region57
    $region56: #{tpu_custom_call.1} parent=1 // pred_region
      _
    $region57: #{tpu_custom_call.1} parent=1 // pred_fallthru
      _
    // Predicated region
    $region58: #{tpu_custom_call.1} parent=1 // pred_check
      _
    $region59: #{tpu_custom_call.1} parent=1 // pred_check_branch
      %58 = sbr.rel (0) target = $region61
    $region60: #{tpu_custom_call.1} parent=1 // pred_region
      _
    $region61: #{tpu_custom_call.1} parent=1 // pred_fallthru
      _
    // Predicated region
    $region62: #{tpu_custom_call.1} parent=1 // pred_check
      _
    $region63: #{tpu_custom_call.1} parent=1 // pred_check_branch
      %60 = sbr.rel (0) target = $region65
    $region64: #{tpu_custom_call.1} parent=1 // pred_region
      _
    $region65: #{tpu_custom_call.1} parent=1 // pred_fallthru
      _
    // Predicated region
    $region66: #{tpu_custom_call.1} parent=1 // pred_check
      _
    $region67: #{tpu_custom_call.1} parent=1 // pred_check_branch
      %62 = sbr.rel (0) target = $region69
    $region68: #{tpu_custom_call.1} parent=1 // pred_region
      _
    $region69: #{tpu_custom_call.1} parent=1 // pred_fallthru
      _
    // Predicated region
    $region70: #{tpu_custom_call.1} parent=1 // pred_check
      _
    $region71: #{tpu_custom_call.1} parent=1 // pred_check_branch
      %64 = sbr.rel (0) target = $region73
    $region72: #{tpu_custom_call.1} parent=1 // pred_region
      _
    $region73: #{tpu_custom_call.1} parent=1 // pred_fallthru
      _
    // Predicated region
    $region74: #{tpu_custom_call.1} parent=1 // pred_check
      _
    $region75: #{tpu_custom_call.1} parent=1 // pred_check_branch
      %66 = sbr.rel (0) target = $region77
    $region76: #{tpu_custom_call.1} parent=1 // pred_region
      _
    $region77: #{tpu_custom_call.1} parent=1 // pred_fallthru
      _
    // Predicated region
    $region78: #{tpu_custom_call.1} parent=1 // pred_check
      _
    $region79: #{tpu_custom_call.1} parent=1 // pred_check_branch
      %68 = sbr.rel (0) target = $region81
    $region80: #{tpu_custom_call.1} parent=1 // pred_region
      _
    $region81: #{tpu_custom_call.1} parent=1 // pred_fallthru
      _
    // Predicated region
    $region82: #{tpu_custom_call.1} parent=1 // pred_check
      _
    $region83: #{tpu_custom_call.1} parent=1 // pred_check_branch
      %70 = sbr.rel (0) target = $region85
    $region84: #{tpu_custom_call.1} parent=1 // pred_region
      _
    $region85: #{tpu_custom_call.1} parent=1 // pred_fallthru
      _
    %v71 = vld [vmem:[%s0] sm:$0xff]
    %v72 = vld [vmem:[%s0 + $0x8] sm:$0xff]
    %v73 = vld [vmem:[%s0 + $0x10] sm:$0x3f]
    %v74 = vld [vmem:[%s0 + $0x18] sm:$0x3f]
    %v75 = vld [vmem:[%s1] sm:$0xff]
    %v76 = vld [vmem:[%s1 + $0x8] sm:$0xff]
    %v77 = vld [vmem:[%s1 + $0x10] sm:$0xff]
    %v78 = vld [vmem:[%s1 + $0x18] sm:$0xff]
    %v79 = vld [vmem:[%s1 + $0x20] sm:$0xff]
    %v80 = vld [vmem:[%s2] sm:$0xff]
    %v81 = vld [vmem:[%s2 + $0x8] sm:$0xff]
    %v82 = vld [vmem:[%s2 + $0x10] sm:$0xff]
    %v83 = vld [vmem:[%s2 + $0x18] sm:$0xff]
    %v84 = vld [vmem:[%s2 + $0x20] sm:$0xff]
    %86 = vset.pattern.permute.xlu0 0
    %87 = vperm.xlu0 %86, %v80
    %v88 = vpop.permute.xlu0 %87
    %91 = vset.pattern.permute.xlu0 0
    %92 = vperm.xlu0 %91, %v81
    %v93 = vpop.permute.xlu0 %92
    %96 = vset.pattern.permute.xlu0 0
    %97 = vperm.xlu0 %96, %v82
    %v98 = vpop.permute.xlu0 %97
    %101 = vset.pattern.permute.xlu0 0
    %102 = vperm.xlu0 %101, %v83
    %v103 = vpop.permute.xlu0 %102
    %106 = vset.pattern.permute.xlu0 0
    %107 = vperm.xlu0 %106, %v84
    %v108 = vpop.permute.xlu0 %107
    %vm110 = vcmask 113664
    %v112 = vsel %vm110, %v75, 0
    %v115 = vsel %vm110, %v76, 0
    %v118 = vsel %vm110, %v77, 0
    %v121 = vsel %vm110, %v78, 0
    %v124 = vsel %vm110, %v79, 0
    %vm126 = vcmask 1045504
    %v128 = vsel %vm126, %v73, 0
    %v131 = vsel %vm126, %v74, 0
    %133 = vmatprep.subr.mxu0 0.0
    %134 = vmatpush1.msra.mxu0 0.0
    %135 = vmatprep.subr.mxu0 0.0
    %136 = vmatpush1.msra.mxu0 0.0
    %137 = vmatprep.subr.mxu0 0.0
    %138 = vmatpush1.msra.mxu0 0.0
    %139 = vmatprep.subr.mxu0 0.0
    %140 = vmatpush1.msra.mxu0 0.0
    %141 = vmatprep.subr.mxu0 0.0
    %142 = vmatpush1.msra.mxu0 0.0
    %143 = vmatprep.subr.mxu0 0.0
    %144 = vmatpush1.msra.mxu0 0.0
    %145 = vmatprep.subr.mxu0 0.0
    %146 = vmatpush1.msra.mxu0 0.0
    %147 = vmatprep.subr.mxu0 0.0
    %148 = vmatpush1.msra.mxu0 0.0
    %149 = vmatprep.subr.mxu0 0.0
    %150 = vmatpush1.msra.mxu0 0.0
    %151 = vmatprep.subr.mxu0 0.0
    %152 = vmatpush1.msra.mxu0 0.0
    %153 = vmatprep.subr.mxu0 0.0
    %154 = vmatpush1.msra.mxu0 0.0
    %155 = vmatprep.subr.mxu0 0.0
    %156 = vmatpush1.msra.mxu0 0.0
    %157 = vmatprep.subr.mxu0 0.0
    %158 = vmatpush1.msra.mxu0 0.0
    %159 = vmatprep.subr.mxu0 0.0
    %160 = vmatpush1.msra.mxu0 0.0
    %161 = vmatprep.subr.mxu0 %v131
    %162 = vmatpush1.msra.mxu0 %v128
    %163 = vmatprep.subr.mxu0 %v72
    %164 = vmatpush1.msra.mxu0 %v71
    %165 = vmatprep.subr.mxu0 0.0
    %166 = vmatpush2.msra.mxu0 0.0
    %167 = vmatprep.subr.mxu0 0.0
    %168 = vmatpush2.msra.mxu0 0.0
    %169 = vmatprep.subr.mxu0 0.0
    %170 = vmatpush2.msra.mxu0 0.0
    %171 = vmatprep.subr.mxu0 0.0
    %172 = vmatpush2.msra.mxu0 0.0
    %173 = vmatprep.subr.mxu0 0.0
    %174 = vmatpush2.msra.mxu0 0.0
    %175 = vmatprep.subr.mxu0 0.0
    %176 = vmatpush2.msra.mxu0 0.0
    %177 = vmatprep.subr.mxu0 0.0
    %178 = vmatpush2.msra.mxu0 0.0
    %179 = vmatprep.subr.mxu0 0.0
    %180 = vmatpush2.msra.mxu0 0.0
    %181 = vmatprep.subr.mxu0 0.0
    %182 = vmatpush2.msra.mxu0 0.0
    %183 = vmatprep.subr.mxu0 0.0
    %184 = vmatpush2.msra.mxu0 0.0
    %185 = vmatprep.subr.mxu0 0.0
    %186 = vmatpush2.msra.mxu0 0.0
    %187 = vmatprep.subr.mxu0 0.0
    %188 = vmatpush2.msra.mxu0 0.0
    %189 = vmatprep.subr.mxu0 0.0
    %190 = vmatpush2.msra.mxu0 0.0
    %191 = vmatprep.subr.mxu0 0.0
    %192 = vmatpush2.msra.mxu0 0.0
    %193 = vmatprep.subr.mxu0 0.0
    %194 = vmatpush2.msra.mxu0 0.0
    %195 = vmatprep.subr.mxu0 0.0
    %196 = vmatpush2.msra.mxu0 0.0
    %197 = vmatprep.mubr.f32.mxu0 0.0
    %198 = vmatmul.mubr.f32.gmra.mxu0 %v112
    %v199 = vpop.f32.mrf.mxu0
    %v200 = vadd.f32 %v88, %v199
    %v201 = vpop.f32.mrf.mxu0
    %v202 = vadd.f32 %v88, %v201
    %203 = vmatprep.mubr.f32.mxu0 0.0
    %204 = vmatmul.mubr.f32.gmra.mxu0 %v115
    %v205 = vpop.f32.mrf.mxu0
    %v206 = vadd.f32 %v93, %v205
    %v207 = vpop.f32.mrf.mxu0
    %v208 = vadd.f32 %v93, %v207
    %209 = vmatprep.mubr.f32.mxu0 0.0
    %210 = vmatmul.mubr.f32.gmra.mxu0 %v118
    %v211 = vpop.f32.mrf.mxu0
    %v212 = vadd.f32 %v98, %v211
    %v213 = vpop.f32.mrf.mxu0
    %v214 = vadd.f32 %v98, %v213
    %215 = vmatprep.mubr.f32.mxu0 0.0
    %216 = vmatmul.mubr.f32.gmra.mxu0 %v121
    %v217 = vpop.f32.mrf.mxu0
    %v218 = vadd.f32 %v103, %v217
    %v219 = vpop.f32.mrf.mxu0
    %v220 = vadd.f32 %v103, %v219
    %221 = vmatprep.mubr.f32.mxu0 0.0
    %222 = vmatmul.mubr.f32.gmra.mxu0 %v124
    %v223 = vpop.f32.mrf.mxu0
    %v224 = vadd.f32 %v108, %v223
    %v225 = vpop.f32.mrf.mxu0
    %v226 = vadd.f32 %v108, %v225
    %227 = vdwg.mxu0
    %v228 = vmul.f32 %v200, 0.01
    %v229 = vmul.f32 %v202, 0.01
    %v230 = vmul.f32 %v206, 0.01
    %v231 = vmul.f32 %v208, 0.01
    %v232 = vmul.f32 %v212, 0.01
    %v233 = vmul.f32 %v214, 0.01
    %v234 = vmul.f32 %v218, 0.01
    %v235 = vmul.f32 %v220, 0.01
    %v236 = vmul.f32 %v224, 0.01
    %v237 = vmul.f32 %v226, 0.01
    %v238 = vmax.f32 %v200, %v228
    %v239 = vmax.f32 %v202, %v229
    %v240 = vmax.f32 %v206, %v230
    %v241 = vmax.f32 %v208, %v231
    %v242 = vmax.f32 %v212, %v232
    %v243 = vmax.f32 %v214, %v233
    %v244 = vmax.f32 %v218, %v234
    %v245 = vmax.f32 %v220, %v235
    %v246 = vmax.f32 %v224, %v236
    %v247 = vmax.f32 %v226, %v237
    %v248 = vld [vmem:[%s3] sm:$0xff]
    %v249 = vld [vmem:[%s3 + $0x8] sm:$0xff]
    %v250 = vld [vmem:[%s3 + $0x10] sm:$0xff]
    %v251 = vld [vmem:[%s3 + $0x18] sm:$0xff]
    %v252 = vld [vmem:[%s3 + $0x20] sm:$0xff]
    %v253 = vld [vmem:[%s3 + $0x28] sm:$0xff]
    %v254 = vld [vmem:[%s3 + $0x30] sm:$0xff]
    %v255 = vld [vmem:[%s3 + $0x38] sm:$0xff]
    %v256 = vld [vmem:[%s3 + $0x40] sm:$0xff]
    %v257 = vld [vmem:[%s3 + $0x48] sm:$0xff]
    %v258 = vld [vmem:[%s3 + $0x50] sm:$0xff]
    %v259 = vld [vmem:[%s3 + $0x58] sm:$0xff]
    %v260 = vld [vmem:[%s3 + $0x60] sm:$0xff]
    %v261 = vld [vmem:[%s3 + $0x68] sm:$0xff]
    %v262 = vld [vmem:[%s3 + $0x70] sm:$0xff]
    %v263 = vld [vmem:[%s3 + $0x78] sm:$0xff]
    %v264 = vld [vmem:[%s3 + $0x80] sm:$0xff]
    %v265 = vld [vmem:[%s3 + $0x88] sm:$0xff]
    %v266 = vld [vmem:[%s3 + $0x90] sm:$0xff]
    %v267 = vld [vmem:[%s3 + $0x98] sm:$0xff]
    %v268 = vld [vmem:[%s3 + $0xa0] sm:$0xff]
    %v269 = vld [vmem:[%s3 + $0xa8] sm:$0xff]
    %v270 = vld [vmem:[%s3 + $0xb0] sm:$0xf]
    %v272 = vsel %vm110, %v248, 0
    %v275 = vsel %vm110, %v249, 0
    %v278 = vsel %vm110, %v250, 0
    %v281 = vsel %vm110, %v251, 0
    %v284 = vsel %vm110, %v252, 0
    %v287 = vsel %vm110, %v253, 0
    %v290 = vsel %vm110, %v254, 0
    %v293 = vsel %vm110, %v255, 0
    %v296 = vsel %vm110, %v256, 0
    %v299 = vsel %vm110, %v257, 0
    %v302 = vsel %vm110, %v258, 0
    %v305 = vsel %vm110, %v259, 0
    %v308 = vsel %vm110, %v260, 0
    %v311 = vsel %vm110, %v261, 0
    %v314 = vsel %vm110, %v262, 0
    %v317 = vsel %vm110, %v263, 0
    %v320 = vsel %vm110, %v264, 0
    %v323 = vsel %vm110, %v265, 0
    %v326 = vsel %vm110, %v266, 0
    %v329 = vsel %vm110, %v267, 0
    %v332 = vsel %vm110, %v268, 0
    %v335 = vsel %vm110, %v269, 0
    %v338 = vsel %vm110, %v270, 0
    %340 = vmatprep.subr.mxu0 0.0
    %341 = vmatpush1.msra.mxu0 0.0
    %342 = vmatprep.subr.mxu0 0.0
    %343 = vmatpush1.msra.mxu0 0.0
    %344 = vmatprep.subr.mxu0 0.0
    %345 = vmatpush1.msra.mxu0 0.0
    %346 = vmatprep.subr.mxu0 0.0
    %347 = vmatpush1.msra.mxu0 0.0
    %348 = vmatprep.subr.mxu0 0.0
    %349 = vmatpush1.msra.mxu0 0.0
    %350 = vmatprep.subr.mxu0 0.0
    %351 = vmatpush1.msra.mxu0 0.0
    %352 = vmatprep.subr.mxu0 0.0
    %353 = vmatpush1.msra.mxu0 0.0
    %354 = vmatprep.subr.mxu0 0.0
    %355 = vmatpush1.msra.mxu0 0.0
    %356 = vmatprep.subr.mxu0 0.0
    %357 = vmatpush1.msra.mxu0 0.0
    %358 = vmatprep.subr.mxu0 0.0
    %359 = vmatpush1.msra.mxu0 0.0
    %360 = vmatprep.subr.mxu0 0.0
    %361 = vmatpush1.msra.mxu0 0.0
    %362 = vmatprep.subr.mxu0 0.0
    %363 = vmatpush1.msra.mxu0 0.0
    %364 = vmatprep.subr.mxu0 0.0
    %365 = vmatpush1.msra.mxu0 0.0
    %366 = vmatprep.subr.mxu0 0.0
    %367 = vmatpush1.msra.mxu0 0.0
    %368 = vmatprep.subr.mxu0 %v131
    %369 = vmatpush1.msra.mxu0 %v128
    %370 = vmatprep.subr.mxu0 %v72
    %371 = vmatpush1.msra.mxu0 %v71
    %372 = vmatprep.subr.mxu0 0.0
    %373 = vmatpush2.msra.mxu0 0.0
    %374 = vmatprep.subr.mxu0 0.0
    %375 = vmatpush2.msra.mxu0 0.0
    %376 = vmatprep.subr.mxu0 0.0
    %377 = vmatpush2.msra.mxu0 0.0
    %378 = vmatprep.subr.mxu0 0.0
    %379 = vmatpush2.msra.mxu0 0.0
    %380 = vmatprep.subr.mxu0 0.0
    %381 = vmatpush2.msra.mxu0 0.0
    %382 = vmatprep.subr.mxu0 0.0
    %383 = vmatpush2.msra.mxu0 0.0
    %384 = vmatprep.subr.mxu0 0.0
    %385 = vmatpush2.msra.mxu0 0.0
    %386 = vmatprep.subr.mxu0 0.0
    %387 = vmatpush2.msra.mxu0 0.0
    %388 = vmatprep.subr.mxu0 0.0
    %389 = vmatpush2.msra.mxu0 0.0
    %390 = vmatprep.subr.mxu0 0.0
    %391 = vmatpush2.msra.mxu0 0.0
    %392 = vmatprep.subr.mxu0 0.0
    %393 = vmatpush2.msra.mxu0 0.0
    %394 = vmatprep.subr.mxu0 0.0
    %395 = vmatpush2.msra.mxu0 0.0
    %396 = vmatprep.subr.mxu0 0.0
    %397 = vmatpush2.msra.mxu0 0.0
    %398 = vmatprep.subr.mxu0 0.0
    %399 = vmatpush2.msra.mxu0 0.0
    %400 = vmatprep.subr.mxu0 0.0
    %401 = vmatpush2.msra.mxu0 0.0
    %402 = vmatprep.subr.mxu0 0.0
    %403 = vmatpush2.msra.mxu0 0.0
    %404 = vmatprep.mubr.f32.mxu0 0.0
    %405 = vmatmul.mubr.f32.gmra.mxu0 %v272
    %v406 = vpop.f32.mrf.mxu0
    %v407 = vadd.f32 0.0, %v406
    %v408 = vpop.f32.mrf.mxu0
    %v409 = vadd.f32 0.0, %v408
    %410 = vmatprep.mubr.f32.mxu0 0.0
    %411 = vmatmul.mubr.f32.gmra.mxu0 %v275
    %v412 = vpop.f32.mrf.mxu0
    %v413 = vadd.f32 0.0, %v412
    %v414 = vpop.f32.mrf.mxu0
    %v415 = vadd.f32 0.0, %v414
    %416 = vmatprep.mubr.f32.mxu0 0.0
    %417 = vmatmul.mubr.f32.gmra.mxu0 %v278
    %v418 = vpop.f32.mrf.mxu0
    %v419 = vadd.f32 0.0, %v418
    %v420 = vpop.f32.mrf.mxu0
    %v421 = vadd.f32 0.0, %v420
    %422 = vmatprep.mubr.f32.mxu0 0.0
    %423 = vmatmul.mubr.f32.gmra.mxu0 %v281
    %v424 = vpop.f32.mrf.mxu0
    %v425 = vadd.f32 0.0, %v424
    %v426 = vpop.f32.mrf.mxu0
    %v427 = vadd.f32 0.0, %v426
    %428 = vmatprep.mubr.f32.mxu0 0.0
    %429 = vmatmul.mubr.f32.gmra.mxu0 %v284
    %v430 = vpop.f32.mrf.mxu0
    %v431 = vadd.f32 0.0, %v430
    %v432 = vpop.f32.mrf.mxu0
    %v433 = vadd.f32 0.0, %v432
    %434 = vmatprep.mubr.f32.mxu0 0.0
    %435 = vmatmul.mubr.f32.gmra.mxu0 %v287
    %v436 = vpop.f32.mrf.mxu0
    %v437 = vadd.f32 0.0, %v436
    %v438 = vpop.f32.mrf.mxu0
    %v439 = vadd.f32 0.0, %v438
    %440 = vmatprep.mubr.f32.mxu0 0.0
    %441 = vmatmul.mubr.f32.gmra.mxu0 %v290
    %v442 = vpop.f32.mrf.mxu0
    %v443 = vadd.f32 0.0, %v442
    %v444 = vpop.f32.mrf.mxu0
    %v445 = vadd.f32 0.0, %v444
    %446 = vmatprep.mubr.f32.mxu0 0.0
    %447 = vmatmul.mubr.f32.gmra.mxu0 %v293
    %v448 = vpop.f32.mrf.mxu0
    %v449 = vadd.f32 0.0, %v448
    %v450 = vpop.f32.mrf.mxu0
    %v451 = vadd.f32 0.0, %v450
    %452 = vmatprep.mubr.f32.mxu0 0.0
    %453 = vmatmul.mubr.f32.gmra.mxu0 %v296
    %v454 = vpop.f32.mrf.mxu0
    %v455 = vadd.f32 0.0, %v454
    %v456 = vpop.f32.mrf.mxu0
    %v457 = vadd.f32 0.0, %v456
    %458 = vmatprep.mubr.f32.mxu0 0.0
    %459 = vmatmul.mubr.f32.gmra.mxu0 %v299
    %v460 = vpop.f32.mrf.mxu0
    %v461 = vadd.f32 0.0, %v460
    %v462 = vpop.f32.mrf.mxu0
    %v463 = vadd.f32 0.0, %v462
    %464 = vmatprep.mubr.f32.mxu0 0.0
    %465 = vmatmul.mubr.f32.gmra.mxu0 %v302
    %v466 = vpop.f32.mrf.mxu0
    %v467 = vadd.f32 0.0, %v466
    %v468 = vpop.f32.mrf.mxu0
    %v469 = vadd.f32 0.0, %v468
    %470 = vmatprep.mubr.f32.mxu0 0.0
    %471 = vmatmul.mubr.f32.gmra.mxu0 %v305
    %v472 = vpop.f32.mrf.mxu0
    %v473 = vadd.f32 0.0, %v472
    %v474 = vpop.f32.mrf.mxu0
    %v475 = vadd.f32 0.0, %v474
    %476 = vmatprep.mubr.f32.mxu0 0.0
    %477 = vmatmul.mubr.f32.gmra.mxu0 %v308
    %v478 = vpop.f32.mrf.mxu0
    %v479 = vadd.f32 0.0, %v478
    %v480 = vpop.f32.mrf.mxu0
    %v481 = vadd.f32 0.0, %v480
    %482 = vmatprep.mubr.f32.mxu0 0.0
    %483 = vmatmul.mubr.f32.gmra.mxu0 %v311
    %v484 = vpop.f32.mrf.mxu0
    %v485 = vadd.f32 0.0, %v484
    %v486 = vpop.f32.mrf.mxu0
    %v487 = vadd.f32 0.0, %v486
    %488 = vmatprep.mubr.f32.mxu0 0.0
    %489 = vmatmul.mubr.f32.gmra.mxu0 %v314
    %v490 = vpop.f32.mrf.mxu0
    %v491 = vadd.f32 0.0, %v490
    %v492 = vpop.f32.mrf.mxu0
    %v493 = vadd.f32 0.0, %v492
    %494 = vmatprep.mubr.f32.mxu0 0.0
    %495 = vmatmul.mubr.f32.gmra.mxu0 %v317
    %v496 = vpop.f32.mrf.mxu0
    %v497 = vadd.f32 0.0, %v496
    %v498 = vpop.f32.mrf.mxu0
    %v499 = vadd.f32 0.0, %v498
    %500 = vmatprep.mubr.f32.mxu0 0.0
    %501 = vmatmul.mubr.f32.gmra.mxu0 %v320
    %v502 = vpop.f32.mrf.mxu0
    %v503 = vadd.f32 0.0, %v502
    %v504 = vpop.f32.mrf.mxu0
    %v505 = vadd.f32 0.0, %v504
    %506 = vmatprep.mubr.f32.mxu0 0.0
    %507 = vmatmul.mubr.f32.gmra.mxu0 %v323
    %v508 = vpop.f32.mrf.mxu0
    %v509 = vadd.f32 0.0, %v508
    %v510 = vpop.f32.mrf.mxu0
    %v511 = vadd.f32 0.0, %v510
    %512 = vmatprep.mubr.f32.mxu0 0.0
    %513 = vmatmul.mubr.f32.gmra.mxu0 %v326
    %v514 = vpop.f32.mrf.mxu0
    %v515 = vadd.f32 0.0, %v514
    %v516 = vpop.f32.mrf.mxu0
    %v517 = vadd.f32 0.0, %v516
    %518 = vmatprep.mubr.f32.mxu0 0.0
    %519 = vmatmul.mubr.f32.gmra.mxu0 %v329
    %v520 = vpop.f32.mrf.mxu0
    %v521 = vadd.f32 0.0, %v520
    %v522 = vpop.f32.mrf.mxu0
    %v523 = vadd.f32 0.0, %v522
    %524 = vmatprep.mubr.f32.mxu0 0.0
    %525 = vmatmul.mubr.f32.gmra.mxu0 %v332
    %v526 = vpop.f32.mrf.mxu0
    %v527 = vadd.f32 0.0, %v526
    %v528 = vpop.f32.mrf.mxu0
    %v529 = vadd.f32 0.0, %v528
    %530 = vmatprep.mubr.f32.mxu0 0.0
    %531 = vmatmul.mubr.f32.gmra.mxu0 %v335
    %v532 = vpop.f32.mrf.mxu0
    %v533 = vadd.f32 0.0, %v532
    %v534 = vpop.f32.mrf.mxu0
    %v535 = vadd.f32 0.0, %v534
    %536 = vmatprep.mubr.f32.mxu0 0.0
    %537 = vmatmul.mubr.f32.gmra.mxu0 %v338
    %v538 = vpop.f32.mrf.mxu0
    %v539 = vadd.f32 0.0, %v538
    %v540 = vpop.f32.mrf.mxu0
    %v541 = vadd.f32 0.0, %v540
    %542 = vdwg.mxu0
    %v543 = vadd.f32 %v71, %v72
    %v544 = vsel %vm126, %v73, 0.0
    %v545 = vadd.f32 %v543, %v544
    %v546 = vsel %vm126, %v74, 0.0
    %v547 = vadd.f32 %v545, %v546
    %548 = vadd.xlane.f32.xlu0 %v547
    %v549 = vpop.xlane.xlu0 %548
    %v550 = vrot.slane %v549, 4
    %v551 = vadd.f32 %v549, %v550
    %v552 = vrot.slane %v551, 2
    %v553 = vadd.f32 %v551, %v552
    %v554 = vrot.slane %v553, 1
    %v555 = vadd.f32 %v553, %v554
    %s556 = vtos %v555
    %v557 = vmul.f32 %v71, %v71
    %v558 = vmul.f32 %v72, %v72
    %v559 = vmul.f32 %v73, %v73
    %v560 = vmul.f32 %v74, %v74
    %v561 = vadd.f32 %v557, %v558
    %v562 = vsel %vm126, %v559, 0.0
    %v563 = vadd.f32 %v561, %v562
    %v564 = vsel %vm126, %v560, 0.0
    %v565 = vadd.f32 %v563, %v564
    %566 = vadd.xlane.f32.xlu0 %v565
    %v567 = vpop.xlane.xlu0 %566
    %v568 = vrot.slane %v567, 4
    %v569 = vadd.f32 %v567, %v568
    %v570 = vrot.slane %v569, 2
    %v571 = vadd.f32 %v569, %v570
    %v572 = vrot.slane %v571, 1
    %v573 = vadd.f32 %v571, %v572
    %s574 = vtos %v573
    %v575 = vld [vmem:[%s4] sm:$0xff]
    %v576 = vld [vmem:[%s4 + $0x8] sm:$0xff]
    %v577 = vld [vmem:[%s4 + $0x10] sm:$0xff]
    %v578 = vld [vmem:[%s4 + $0x18] sm:$0xff]
    %v579 = vld [vmem:[%s4 + $0x20] sm:$0xff]
    %v580 = vadd.f32 %v238, %v239
    %v581 = vadd.f32 %v580, %v240
    %v582 = vadd.f32 %v581, %v241
    %v583 = vadd.f32 %v582, %v242
    %v584 = vadd.f32 %v583, %v243
    %v585 = vadd.f32 %v584, %v244
    %v586 = vadd.f32 %v585, %v245
    %v587 = vadd.f32 %v586, %v246
    %v588 = vadd.f32 %v587, %v247
    %589 = vadd.xlane.f32.xlu0 %v588
    %v590 = vpop.xlane.xlu0 %589
    %v591 = vrot.slane %v590, 4
    %v592 = vadd.f32 %v590, %v591
    %v593 = vrot.slane %v592, 2
    %v594 = vadd.f32 %v592, %v593
    %v595 = vrot.slane %v594, 1
    %v596 = vadd.f32 %v594, %v595
    %s597 = vtos %v596
    %s598 = sadd.f32 %s597, %s556
    %v599 = vmul.f32 %v238, %v238
    %v600 = vmul.f32 %v239, %v239
    %v601 = vmul.f32 %v240, %v240
    %v602 = vmul.f32 %v241, %v241
    %v603 = vmul.f32 %v242, %v242
    %v604 = vmul.f32 %v243, %v243
    %v605 = vmul.f32 %v244, %v244
    %v606 = vmul.f32 %v245, %v245
    %v607 = vmul.f32 %v246, %v246
    %v608 = vmul.f32 %v247, %v247
    %v609 = vadd.f32 %v599, %v600
    %v610 = vadd.f32 %v609, %v601
    %v611 = vadd.f32 %v610, %v602
    %v612 = vadd.f32 %v611, %v603
    %v613 = vadd.f32 %v612, %v604
    %v614 = vadd.f32 %v613, %v605
    %v615 = vadd.f32 %v614, %v606
    %v616 = vadd.f32 %v615, %v607
    %v617 = vadd.f32 %v616, %v608
    %618 = vadd.xlane.f32.xlu0 %v617
    %v619 = vpop.xlane.xlu0 %618
    %v620 = vrot.slane %v619, 4
    %v621 = vadd.f32 %v619, %v620
    %v622 = vrot.slane %v621, 2
    %v623 = vadd.f32 %v621, %v622
    %v624 = vrot.slane %v623, 1
    %v625 = vadd.f32 %v623, %v624
    %s626 = vtos %v625
    %s627 = sadd.f32 %s626, %s574
    %v628 = vrcp.pop 13824.0
    %s629 = vtos %v628
    %s630 = smul.f32 %s598, %s629
    %s631 = smul.f32 %s630, 13824.0
    %s632 = smul.f32 %s631, %s630
    %s633 = ssub.f32 %s627, %s632
    %v634 = vrcp.pop 13823.0
    %s635 = vtos %v634
    %s636 = smul.f32 %s633, %s635
    %v637 = vstv %s636
    %v638 = vrsqrt.pop %v637
    %s639 = vtos %v638
    %v640 = vld [vmem:[%s6] sm:$0xff]
    %v641 = vld [vmem:[%s6 + $0x8] sm:$0xff]
    %v642 = vld [vmem:[%s6 + $0x10] sm:$0xff]
    %v643 = vld [vmem:[%s6 + $0x18] sm:$0xff]
    %v644 = vld [vmem:[%s6 + $0x20] sm:$0xff]
    %s645 = smul.f32 %s639, %s630
    %v646 = vld [vmem:[%s5] sm:$0xff]
    %v647 = vld [vmem:[%s5 + $0x8] sm:$0xff]
    %v648 = vld [vmem:[%s5 + $0x10] sm:$0xff]
    %v649 = vld [vmem:[%s5 + $0x18] sm:$0xff]
    %v650 = vld [vmem:[%s5 + $0x20] sm:$0xff]
    %v651 = vstv %s645
    %v652 = vmul.f32 %v651, %v646
    %v653 = vmul.f32 %v651, %v647
    %v654 = vmul.f32 %v651, %v648
    %v655 = vmul.f32 %v651, %v649
    %v656 = vmul.f32 %v651, %v650
    %v657 = vsub.f32 %v640, %v652
    %v658 = vsub.f32 %v641, %v653
    %v659 = vsub.f32 %v642, %v654
    %v660 = vsub.f32 %v643, %v655
    %v661 = vsub.f32 %v644, %v656
    %vm662 = vcmask 326656
    %v664 = vsel %vm662, %v575, 0
    %v667 = vsel %vm662, %v576, 0
    %v670 = vsel %vm662, %v577, 0
    %v673 = vsel %vm662, %v578, 0
    %v676 = vsel %vm662, %v579, 0
    %678 = vmatprep.subr.mxu0 0.0
    %679 = vmatpush1.msra.mxu0 0.0
    %680 = vmatprep.subr.mxu0 0.0
    %681 = vmatpush1.msra.mxu0 0.0
    %682 = vmatprep.subr.mxu0 0.0
    %683 = vmatpush1.msra.mxu0 0.0
    %684 = vmatprep.subr.mxu0 0.0
    %685 = vmatpush1.msra.mxu0 0.0
    %686 = vmatprep.subr.mxu0 0.0
    %687 = vmatpush1.msra.mxu0 0.0
    %688 = vmatprep.subr.mxu0 0.0
    %689 = vmatpush1.msra.mxu0 0.0
    %690 = vmatprep.subr.mxu0 0.0
    %691 = vmatpush1.msra.mxu0 0.0
    %692 = vmatprep.subr.mxu0 0.0
    %693 = vmatpush1.msra.mxu0 0.0
    %694 = vmatprep.subr.mxu0 0.0
    %695 = vmatpush1.msra.mxu0 0.0
    %696 = vmatprep.subr.mxu0 0.0
    %697 = vmatpush1.msra.mxu0 0.0
    %698 = vmatprep.subr.mxu0 0.0
    %699 = vmatpush1.msra.mxu0 0.0
    %700 = vmatprep.subr.mxu0 %v247
    %701 = vmatpush1.msra.mxu0 %v246
    %702 = vmatprep.subr.mxu0 %v245
    %703 = vmatpush1.msra.mxu0 %v244
    %704 = vmatprep.subr.mxu0 %v243
    %705 = vmatpush1.msra.mxu0 %v242
    %706 = vmatprep.subr.mxu0 %v241
    %707 = vmatpush1.msra.mxu0 %v240
    %708 = vmatprep.subr.mxu0 %v239
    %709 = vmatpush1.msra.mxu0 %v238
    %710 = vmatprep.subr.mxu0 0.0
    %711 = vmatpush2.msra.mxu0 0.0
    %712 = vmatprep.subr.mxu0 0.0
    %713 = vmatpush2.msra.mxu0 0.0
    %714 = vmatprep.subr.mxu0 0.0
    %715 = vmatpush2.msra.mxu0 0.0
    %716 = vmatprep.subr.mxu0 0.0
    %717 = vmatpush2.msra.mxu0 0.0
    %718 = vmatprep.subr.mxu0 0.0
    %719 = vmatpush2.msra.mxu0 0.0
    %720 = vmatprep.subr.mxu0 0.0
    %721 = vmatpush2.msra.mxu0 0.0
    %722 = vmatprep.subr.mxu0 0.0
    %723 = vmatpush2.msra.mxu0 0.0
    %724 = vmatprep.subr.mxu0 0.0
    %725 = vmatpush2.msra.mxu0 0.0
    %726 = vmatprep.subr.mxu0 0.0
    %727 = vmatpush2.msra.mxu0 0.0
    %728 = vmatprep.subr.mxu0 0.0
    %729 = vmatpush2.msra.mxu0 0.0
    %730 = vmatprep.subr.mxu0 0.0
    %731 = vmatpush2.msra.mxu0 0.0
    %732 = vmatprep.subr.mxu0 0.0
    %733 = vmatpush2.msra.mxu0 0.0
    %734 = vmatprep.subr.mxu0 0.0
    %735 = vmatpush2.msra.mxu0 0.0
    %736 = vmatprep.subr.mxu0 0.0
    %737 = vmatpush2.msra.mxu0 0.0
    %738 = vmatprep.subr.mxu0 0.0
    %739 = vmatpush2.msra.mxu0 0.0
    %740 = vmatprep.subr.mxu0 0.0
    %741 = vmatpush2.msra.mxu0 0.0
    %742 = vmatprep.mubr.f32.mxu0 0.0
    %743 = vmatmul.mubr.f32.gmra.mxu0 %v664
    %v744 = vpop.f32.mrf.mxu0
    %v745 = vadd.f32 %v407, %v744
    %v746 = vpop.f32.mrf.mxu0
    %v747 = vadd.f32 %v409, %v746
    %748 = vmatprep.mubr.f32.mxu0 0.0
    %749 = vmatmul.mubr.f32.gmra.mxu0 %v667
    %v750 = vpop.f32.mrf.mxu0
    %v751 = vadd.f32 %v413, %v750
    %v752 = vpop.f32.mrf.mxu0
    %v753 = vadd.f32 %v415, %v752
    %754 = vmatprep.mubr.f32.mxu0 0.0
    %755 = vmatmul.mubr.f32.gmra.mxu0 %v670
    %v756 = vpop.f32.mrf.mxu0
    %v757 = vadd.f32 %v419, %v756
    %v758 = vpop.f32.mrf.mxu0
    %v759 = vadd.f32 %v421, %v758
    %760 = vmatprep.mubr.f32.mxu0 0.0
    %761 = vmatmul.mubr.f32.gmra.mxu0 %v673
    %v762 = vpop.f32.mrf.mxu0
    %v763 = vadd.f32 %v425, %v762
    %v764 = vpop.f32.mrf.mxu0
    %v765 = vadd.f32 %v427, %v764
    %766 = vmatprep.mubr.f32.mxu0 0.0
    %767 = vmatmul.mubr.f32.gmra.mxu0 %v676
    %v768 = vpop.f32.mrf.mxu0
    %v769 = vadd.f32 %v431, %v768
    %v770 = vpop.f32.mrf.mxu0
    %v771 = vadd.f32 %v433, %v770
    %772 = vdwg.mxu0
    %v773 = vstv %s639
    %v774 = vmul.f32 %v773, %v745
    %v775 = vmul.f32 %v773, %v747
    %v776 = vmul.f32 %v773, %v751
    %v777 = vmul.f32 %v773, %v753
    %v778 = vmul.f32 %v773, %v757
    %v779 = vmul.f32 %v773, %v759
    %v780 = vmul.f32 %v773, %v763
    %v781 = vmul.f32 %v773, %v765
    %v782 = vmul.f32 %v773, %v769
    %v783 = vmul.f32 %v773, %v771
    %785 = vset.pattern.permute.xlu0 0
    %786 = vperm.xlu0 %785, %v657
    %v787 = vpop.permute.xlu0 %786
    %790 = vset.pattern.permute.xlu0 0
    %791 = vperm.xlu0 %790, %v658
    %v792 = vpop.permute.xlu0 %791
    %795 = vset.pattern.permute.xlu0 0
    %796 = vperm.xlu0 %795, %v659
    %v797 = vpop.permute.xlu0 %796
    %800 = vset.pattern.permute.xlu0 0
    %801 = vperm.xlu0 %800, %v660
    %v802 = vpop.permute.xlu0 %801
    %805 = vset.pattern.permute.xlu0 0
    %806 = vperm.xlu0 %805, %v661
    %v807 = vpop.permute.xlu0 %806
    %v809 = vadd.f32 %v774, %v787
    %v810 = vadd.f32 %v775, %v787
    %v811 = vadd.f32 %v776, %v792
    %v812 = vadd.f32 %v777, %v792
    %v813 = vadd.f32 %v778, %v797
    %v814 = vadd.f32 %v779, %v797
    %v815 = vadd.f32 %v780, %v802
    %v816 = vadd.f32 %v781, %v802
    %v817 = vadd.f32 %v782, %v807
    %v818 = vadd.f32 %v783, %v807
    %v819 = vmul.f32 %v809, 0.01
    %v820 = vmul.f32 %v810, 0.01
    %v821 = vmul.f32 %v811, 0.01
    %v822 = vmul.f32 %v812, 0.01
    %v823 = vmul.f32 %v813, 0.01
    %v824 = vmul.f32 %v814, 0.01
    %v825 = vmul.f32 %v815, 0.01
    %v826 = vmul.f32 %v816, 0.01
    %v827 = vmul.f32 %v817, 0.01
    %v828 = vmul.f32 %v818, 0.01
    %v829 = vmax.f32 %v809, %v819
    %v830 = vmax.f32 %v810, %v820
    %v831 = vmax.f32 %v811, %v821
    %v832 = vmax.f32 %v812, %v822
    %v833 = vmax.f32 %v813, %v823
    %v834 = vmax.f32 %v814, %v824
    %v835 = vmax.f32 %v815, %v825
    %v836 = vmax.f32 %v816, %v826
    %v837 = vmax.f32 %v817, %v827
    %v838 = vmax.f32 %v818, %v828
    %v839 = vld [vmem:[%s7] sm:$0xff]
    %v840 = vld [vmem:[%s7 + $0x8] sm:$0xff]
    %v841 = vld [vmem:[%s7 + $0x10] sm:$0xff]
    %v842 = vld [vmem:[%s7 + $0x18] sm:$0xff]
    %v843 = vld [vmem:[%s7 + $0x20] sm:$0xff]
    %v844 = vadd.f32 %v829, %v830
    %v845 = vadd.f32 %v844, %v831
    %v846 = vadd.f32 %v845, %v832
    %v847 = vadd.f32 %v846, %v833
    %v848 = vadd.f32 %v847, %v834
    %v849 = vadd.f32 %v848, %v835
    %v850 = vadd.f32 %v849, %v836
    %v851 = vadd.f32 %v850, %v837
    %v852 = vadd.f32 %v851, %v838
    %853 = vadd.xlane.f32.xlu0 %v852
    %v854 = vpop.xlane.xlu0 %853
    %v855 = vrot.slane %v854, 4
    %v856 = vadd.f32 %v854, %v855
    %v857 = vrot.slane %v856, 2
    %v858 = vadd.f32 %v856, %v857
    %v859 = vrot.slane %v858, 1
    %v860 = vadd.f32 %v858, %v859
    %s861 = vtos %v860
    %s862 = sadd.f32 %s861, %s556
    %v863 = vmul.f32 %v829, %v829
    %v864 = vmul.f32 %v830, %v830
    %v865 = vmul.f32 %v831, %v831
    %v866 = vmul.f32 %v832, %v832
    %v867 = vmul.f32 %v833, %v833
    %v868 = vmul.f32 %v834, %v834
    %v869 = vmul.f32 %v835, %v835
    %v870 = vmul.f32 %v836, %v836
    %v871 = vmul.f32 %v837, %v837
    %v872 = vmul.f32 %v838, %v838
    %v873 = vadd.f32 %v863, %v864
    %v874 = vadd.f32 %v873, %v865
    %v875 = vadd.f32 %v874, %v866
    %v876 = vadd.f32 %v875, %v867
    %v877 = vadd.f32 %v876, %v868
    %v878 = vadd.f32 %v877, %v869
    %v879 = vadd.f32 %v878, %v870
    %v880 = vadd.f32 %v879, %v871
    %v881 = vadd.f32 %v880, %v872
    %882 = vadd.xlane.f32.xlu0 %v881
    %v883 = vpop.xlane.xlu0 %882
    %v884 = vrot.slane %v883, 4
    %v885 = vadd.f32 %v883, %v884
    %v886 = vrot.slane %v885, 2
    %v887 = vadd.f32 %v885, %v886
    %v888 = vrot.slane %v887, 1
    %v889 = vadd.f32 %v887, %v888
    %s890 = vtos %v889
    %s891 = sadd.f32 %s890, %s574
    %v892 = vrcp.pop 13824.0
    %s893 = vtos %v892
    %s894 = smul.f32 %s862, %s893
    %s895 = smul.f32 %s894, 13824.0
    %s896 = smul.f32 %s895, %s894
    %s897 = ssub.f32 %s891, %s896
    %v898 = vrcp.pop 13823.0
    %s899 = vtos %v898
    %s900 = smul.f32 %s897, %s899
    %v901 = vstv %s900
    %v902 = vrsqrt.pop %v901
    %s903 = vtos %v902
    %v904 = vld [vmem:[%s9] sm:$0xff]
    %v905 = vld [vmem:[%s9 + $0x8] sm:$0xff]
    %v906 = vld [vmem:[%s9 + $0x10] sm:$0xff]
    %v907 = vld [vmem:[%s9 + $0x18] sm:$0xff]
    %v908 = vld [vmem:[%s9 + $0x20] sm:$0xff]
    %s909 = smul.f32 %s903, %s894
    %v910 = vld [vmem:[%s8] sm:$0xff]
    %v911 = vld [vmem:[%s8 + $0x8] sm:$0xff]
    %v912 = vld [vmem:[%s8 + $0x10] sm:$0xff]
    %v913 = vld [vmem:[%s8 + $0x18] sm:$0xff]
    %v914 = vld [vmem:[%s8 + $0x20] sm:$0xff]
    %v915 = vstv %s909
    %v916 = vmul.f32 %v915, %v910
    %v917 = vmul.f32 %v915, %v911
    %v918 = vmul.f32 %v915, %v912
    %v919 = vmul.f32 %v915, %v913
    %v920 = vmul.f32 %v915, %v914
    %v921 = vsub.f32 %v904, %v916
    %v922 = vsub.f32 %v905, %v917
    %v923 = vsub.f32 %v906, %v918
    %v924 = vsub.f32 %v907, %v919
    %v925 = vsub.f32 %v908, %v920
    %v927 = vsel %vm662, %v839, 0
    %v930 = vsel %vm662, %v840, 0
    %v933 = vsel %vm662, %v841, 0
    %v936 = vsel %vm662, %v842, 0
    %v939 = vsel %vm662, %v843, 0
    %941 = vmatprep.subr.mxu0 0.0
    %942 = vmatpush1.msra.mxu0 0.0
    %943 = vmatprep.subr.mxu0 0.0
    %944 = vmatpush1.msra.mxu0 0.0
    %945 = vmatprep.subr.mxu0 0.0
    %946 = vmatpush1.msra.mxu0 0.0
    %947 = vmatprep.subr.mxu0 0.0
    %948 = vmatpush1.msra.mxu0 0.0
    %949 = vmatprep.subr.mxu0 0.0
    %950 = vmatpush1.msra.mxu0 0.0
    %951 = vmatprep.subr.mxu0 0.0
    %952 = vmatpush1.msra.mxu0 0.0
    %953 = vmatprep.subr.mxu0 0.0
    %954 = vmatpush1.msra.mxu0 0.0
    %955 = vmatprep.subr.mxu0 0.0
    %956 = vmatpush1.msra.mxu0 0.0
    %957 = vmatprep.subr.mxu0 0.0
    %958 = vmatpush1.msra.mxu0 0.0
    %959 = vmatprep.subr.mxu0 0.0
    %960 = vmatpush1.msra.mxu0 0.0
    %961 = vmatprep.subr.mxu0 0.0
    %962 = vmatpush1.msra.mxu0 0.0
    %963 = vmatprep.subr.mxu0 %v838
    %964 = vmatpush1.msra.mxu0 %v837
    %965 = vmatprep.subr.mxu0 %v836
    %966 = vmatpush1.msra.mxu0 %v835
    %967 = vmatprep.subr.mxu0 %v834
    %968 = vmatpush1.msra.mxu0 %v833
    %969 = vmatprep.subr.mxu0 %v832
    %970 = vmatpush1.msra.mxu0 %v831
    %971 = vmatprep.subr.mxu0 %v830
    %972 = vmatpush1.msra.mxu0 %v829
    %973 = vmatprep.subr.mxu0 0.0
    %974 = vmatpush2.msra.mxu0 0.0
    %975 = vmatprep.subr.mxu0 0.0
    %976 = vmatpush2.msra.mxu0 0.0
    %977 = vmatprep.subr.mxu0 0.0
    %978 = vmatpush2.msra.mxu0 0.0
    %979 = vmatprep.subr.mxu0 0.0
    %980 = vmatpush2.msra.mxu0 0.0
    %981 = vmatprep.subr.mxu0 0.0
    %982 = vmatpush2.msra.mxu0 0.0
    %983 = vmatprep.subr.mxu0 0.0
    %984 = vmatpush2.msra.mxu0 0.0
    %985 = vmatprep.subr.mxu0 0.0
    %986 = vmatpush2.msra.mxu0 0.0
    %987 = vmatprep.subr.mxu0 0.0
    %988 = vmatpush2.msra.mxu0 0.0
    %989 = vmatprep.subr.mxu0 0.0
    %990 = vmatpush2.msra.mxu0 0.0
    %991 = vmatprep.subr.mxu0 0.0
    %992 = vmatpush2.msra.mxu0 0.0
    %993 = vmatprep.subr.mxu0 0.0
    %994 = vmatpush2.msra.mxu0 0.0
    %995 = vmatprep.subr.mxu0 0.0
    %996 = vmatpush2.msra.mxu0 0.0
    %997 = vmatprep.subr.mxu0 0.0
    %998 = vmatpush2.msra.mxu0 0.0
    %999 = vmatprep.subr.mxu0 0.0
    %1000 = vmatpush2.msra.mxu0 0.0
    %1001 = vmatprep.subr.mxu0 0.0
    %1002 = vmatpush2.msra.mxu0 0.0
    %1003 = vmatprep.subr.mxu0 0.0
    %1004 = vmatpush2.msra.mxu0 0.0
    %1005 = vmatprep.mubr.f32.mxu0 0.0
    %1006 = vmatmul.mubr.f32.gmra.mxu0 %v927
    %v1007 = vpop.f32.mrf.mxu0
    %v1008 = vadd.f32 %v437, %v1007
    %v1009 = vpop.f32.mrf.mxu0
    %v1010 = vadd.f32 %v439, %v1009
    %1011 = vmatprep.mubr.f32.mxu0 0.0
    %1012 = vmatmul.mubr.f32.gmra.mxu0 %v930
    %v1013 = vpop.f32.mrf.mxu0
    %v1014 = vadd.f32 %v443, %v1013
    %v1015 = vpop.f32.mrf.mxu0
    %v1016 = vadd.f32 %v445, %v1015
    %1017 = vmatprep.mubr.f32.mxu0 0.0
    %1018 = vmatmul.mubr.f32.gmra.mxu0 %v933
    %v1019 = vpop.f32.mrf.mxu0
    %v1020 = vadd.f32 %v449, %v1019
    %v1021 = vpop.f32.mrf.mxu0
    %v1022 = vadd.f32 %v451, %v1021
    %1023 = vmatprep.mubr.f32.mxu0 0.0
    %1024 = vmatmul.mubr.f32.gmra.mxu0 %v936
    %v1025 = vpop.f32.mrf.mxu0
    %v1026 = vadd.f32 %v455, %v1025
    %v1027 = vpop.f32.mrf.mxu0
    %v1028 = vadd.f32 %v457, %v1027
    %1029 = vmatprep.mubr.f32.mxu0 0.0
    %1030 = vmatmul.mubr.f32.gmra.mxu0 %v939
    %v1031 = vpop.f32.mrf.mxu0
    %v1032 = vadd.f32 %v461, %v1031
    %v1033 = vpop.f32.mrf.mxu0
    %v1034 = vadd.f32 %v463, %v1033
    %1035 = vdwg.mxu0
    %v1036 = vstv %s903
    %v1037 = vmul.f32 %v1036, %v1008
    %v1038 = vmul.f32 %v1036, %v1010
    %v1039 = vmul.f32 %v1036, %v1014
    %v1040 = vmul.f32 %v1036, %v1016
    %v1041 = vmul.f32 %v1036, %v1020
    %v1042 = vmul.f32 %v1036, %v1022
    %v1043 = vmul.f32 %v1036, %v1026
    %v1044 = vmul.f32 %v1036, %v1028
    %v1045 = vmul.f32 %v1036, %v1032
    %v1046 = vmul.f32 %v1036, %v1034
    %1048 = vset.pattern.permute.xlu0 0
    %1049 = vperm.xlu0 %1048, %v921
    %v1050 = vpop.permute.xlu0 %1049
    %1053 = vset.pattern.permute.xlu0 0
    %1054 = vperm.xlu0 %1053, %v922
    %v1055 = vpop.permute.xlu0 %1054
    %1058 = vset.pattern.permute.xlu0 0
    %1059 = vperm.xlu0 %1058, %v923
    %v1060 = vpop.permute.xlu0 %1059
    %1063 = vset.pattern.permute.xlu0 0
    %1064 = vperm.xlu0 %1063, %v924
    %v1065 = vpop.permute.xlu0 %1064
    %1068 = vset.pattern.permute.xlu0 0
    %1069 = vperm.xlu0 %1068, %v925
    %v1070 = vpop.permute.xlu0 %1069
    %v1072 = vadd.f32 %v1037, %v1050
    %v1073 = vadd.f32 %v1038, %v1050
    %v1074 = vadd.f32 %v1039, %v1055
    %v1075 = vadd.f32 %v1040, %v1055
    %v1076 = vadd.f32 %v1041, %v1060
    %v1077 = vadd.f32 %v1042, %v1060
    %v1078 = vadd.f32 %v1043, %v1065
    %v1079 = vadd.f32 %v1044, %v1065
    %v1080 = vadd.f32 %v1045, %v1070
    %v1081 = vadd.f32 %v1046, %v1070
    %v1082 = vmul.f32 %v1072, 0.01
    %v1083 = vmul.f32 %v1073, 0.01
    %v1084 = vmul.f32 %v1074, 0.01
    %v1085 = vmul.f32 %v1075, 0.01
    %v1086 = vmul.f32 %v1076, 0.01
    %v1087 = vmul.f32 %v1077, 0.01
    %v1088 = vmul.f32 %v1078, 0.01
    %v1089 = vmul.f32 %v1079, 0.01
    %v1090 = vmul.f32 %v1080, 0.01
    %v1091 = vmul.f32 %v1081, 0.01
    %v1092 = vmax.f32 %v1072, %v1082
    %v1093 = vmax.f32 %v1073, %v1083
    %v1094 = vmax.f32 %v1074, %v1084
    %v1095 = vmax.f32 %v1075, %v1085
    %v1096 = vmax.f32 %v1076, %v1086
    %v1097 = vmax.f32 %v1077, %v1087
    %v1098 = vmax.f32 %v1078, %v1088
    %v1099 = vmax.f32 %v1079, %v1089
    %v1100 = vmax.f32 %v1080, %v1090
    %v1101 = vmax.f32 %v1081, %v1091
    %v1102 = vld [vmem:[%s10] sm:$0xff]
    %v1103 = vld [vmem:[%s10 + $0x8] sm:$0xff]
    %v1104 = vld [vmem:[%s10 + $0x10] sm:$0xff]
    %v1105 = vld [vmem:[%s10 + $0x18] sm:$0xff]
    %v1106 = vld [vmem:[%s10 + $0x20] sm:$0xff]
    %v1107 = vadd.f32 %v1092, %v1093
    %v1108 = vadd.f32 %v1107, %v1094
    %v1109 = vadd.f32 %v1108, %v1095
    %v1110 = vadd.f32 %v1109, %v1096
    %v1111 = vadd.f32 %v1110, %v1097
    %v1112 = vadd.f32 %v1111, %v1098
    %v1113 = vadd.f32 %v1112, %v1099
    %v1114 = vadd.f32 %v1113, %v1100
    %v1115 = vadd.f32 %v1114, %v1101
    %1116 = vadd.xlane.f32.xlu0 %v1115
    %v1117 = vpop.xlane.xlu0 %1116
    %v1118 = vrot.slane %v1117, 4
    %v1119 = vadd.f32 %v1117, %v1118
    %v1120 = vrot.slane %v1119, 2
    %v1121 = vadd.f32 %v1119, %v1120
    %v1122 = vrot.slane %v1121, 1
    %v1123 = vadd.f32 %v1121, %v1122
    %s1124 = vtos %v1123
    %s1125 = sadd.f32 %s1124, %s556
    %v1126 = vmul.f32 %v1092, %v1092
    %v1127 = vmul.f32 %v1093, %v1093
    %v1128 = vmul.f32 %v1094, %v1094
    %v1129 = vmul.f32 %v1095, %v1095
    %v1130 = vmul.f32 %v1096, %v1096
    %v1131 = vmul.f32 %v1097, %v1097
    %v1132 = vmul.f32 %v1098, %v1098
    %v1133 = vmul.f32 %v1099, %v1099
    %v1134 = vmul.f32 %v1100, %v1100
    %v1135 = vmul.f32 %v1101, %v1101
    %v1136 = vadd.f32 %v1126, %v1127
    %v1137 = vadd.f32 %v1136, %v1128
    %v1138 = vadd.f32 %v1137, %v1129
    %v1139 = vadd.f32 %v1138, %v1130
    %v1140 = vadd.f32 %v1139, %v1131
    %v1141 = vadd.f32 %v1140, %v1132
    %v1142 = vadd.f32 %v1141, %v1133
    %v1143 = vadd.f32 %v1142, %v1134
    %v1144 = vadd.f32 %v1143, %v1135
    %1145 = vadd.xlane.f32.xlu0 %v1144
    %v1146 = vpop.xlane.xlu0 %1145
    %v1147 = vrot.slane %v1146, 4
    %v1148 = vadd.f32 %v1146, %v1147
    %v1149 = vrot.slane %v1148, 2
    %v1150 = vadd.f32 %v1148, %v1149
    %v1151 = vrot.slane %v1150, 1
    %v1152 = vadd.f32 %v1150, %v1151
    %s1153 = vtos %v1152
    %s1154 = sadd.f32 %s1153, %s574
    %v1155 = vrcp.pop 13824.0
    %s1156 = vtos %v1155
    %s1157 = smul.f32 %s1125, %s1156
    %s1158 = smul.f32 %s1157, 13824.0
    %s1159 = smul.f32 %s1158, %s1157
    %s1160 = ssub.f32 %s1154, %s1159
    %v1161 = vrcp.pop 13823.0
    %s1162 = vtos %v1161
    %s1163 = smul.f32 %s1160, %s1162
    %v1164 = vstv %s1163
    %v1165 = vrsqrt.pop %v1164
    %s1166 = vtos %v1165
    %v1167 = vld [vmem:[%s12] sm:$0xff]
    %v1168 = vld [vmem:[%s12 + $0x8] sm:$0xff]
    %v1169 = vld [vmem:[%s12 + $0x10] sm:$0xff]
    %v1170 = vld [vmem:[%s12 + $0x18] sm:$0xff]
    %v1171 = vld [vmem:[%s12 + $0x20] sm:$0xff]
    %s1172 = smul.f32 %s1166, %s1157
    %v1173 = vld [vmem:[%s11] sm:$0xff]
    %v1174 = vld [vmem:[%s11 + $0x8] sm:$0xff]
    %v1175 = vld [vmem:[%s11 + $0x10] sm:$0xff]
    %v1176 = vld [vmem:[%s11 + $0x18] sm:$0xff]
    %v1177 = vld [vmem:[%s11 + $0x20] sm:$0xff]
    %v1178 = vstv %s1172
    %v1179 = vmul.f32 %v1178, %v1173
    %v1180 = vmul.f32 %v1178, %v1174
    %v1181 = vmul.f32 %v1178, %v1175
    %v1182 = vmul.f32 %v1178, %v1176
    %v1183 = vmul.f32 %v1178, %v1177
    %v1184 = vsub.f32 %v1167, %v1179
    %v1185 = vsub.f32 %v1168, %v1180
    %v1186 = vsub.f32 %v1169, %v1181
    %v1187 = vsub.f32 %v1170, %v1182
    %v1188 = vsub.f32 %v1171, %v1183
    %v1190 = vsel %vm662, %v1102, 0
    %v1193 = vsel %vm662, %v1103, 0
    %v1196 = vsel %vm662, %v1104, 0
    %v1199 = vsel %vm662, %v1105, 0
    %v1202 = vsel %vm662, %v1106, 0
    %1204 = vmatprep.subr.mxu0 0.0
    %1205 = vmatpush1.msra.mxu0 0.0
    %1206 = vmatprep.subr.mxu0 0.0
    %1207 = vmatpush1.msra.mxu0 0.0
    %1208 = vmatprep.subr.mxu0 0.0
    %1209 = vmatpush1.msra.mxu0 0.0
    %1210 = vmatprep.subr.mxu0 0.0
    %1211 = vmatpush1.msra.mxu0 0.0
    %1212 = vmatprep.subr.mxu0 0.0
    %1213 = vmatpush1.msra.mxu0 0.0
    %1214 = vmatprep.subr.mxu0 0.0
    %1215 = vmatpush1.msra.mxu0 0.0
    %1216 = vmatprep.subr.mxu0 0.0
    %1217 = vmatpush1.msra.mxu0 0.0
    %1218 = vmatprep.subr.mxu0 0.0
    %1219 = vmatpush1.msra.mxu0 0.0
    %1220 = vmatprep.subr.mxu0 0.0
    %1221 = vmatpush1.msra.mxu0 0.0
    %1222 = vmatprep.subr.mxu0 0.0
    %1223 = vmatpush1.msra.mxu0 0.0
    %1224 = vmatprep.subr.mxu0 0.0
    %1225 = vmatpush1.msra.mxu0 0.0
    %1226 = vmatprep.subr.mxu0 %v1101
    %1227 = vmatpush1.msra.mxu0 %v1100
    %1228 = vmatprep.subr.mxu0 %v1099
    %1229 = vmatpush1.msra.mxu0 %v1098
    %1230 = vmatprep.subr.mxu0 %v1097
    %1231 = vmatpush1.msra.mxu0 %v1096
    %1232 = vmatprep.subr.mxu0 %v1095
    %1233 = vmatpush1.msra.mxu0 %v1094
    %1234 = vmatprep.subr.mxu0 %v1093
    %1235 = vmatpush1.msra.mxu0 %v1092
    %1236 = vmatprep.subr.mxu0 0.0
    %1237 = vmatpush2.msra.mxu0 0.0
    %1238 = vmatprep.subr.mxu0 0.0
    %1239 = vmatpush2.msra.mxu0 0.0
    %1240 = vmatprep.subr.mxu0 0.0
    %1241 = vmatpush2.msra.mxu0 0.0
    %1242 = vmatprep.subr.mxu0 0.0
    %1243 = vmatpush2.msra.mxu0 0.0
    %1244 = vmatprep.subr.mxu0 0.0
    %1245 = vmatpush2.msra.mxu0 0.0
    %1246 = vmatprep.subr.mxu0 0.0
    %1247 = vmatpush2.msra.mxu0 0.0
    %1248 = vmatprep.subr.mxu0 0.0
    %1249 = vmatpush2.msra.mxu0 0.0
    %1250 = vmatprep.subr.mxu0 0.0
    %1251 = vmatpush2.msra.mxu0 0.0
    %1252 = vmatprep.subr.mxu0 0.0
    %1253 = vmatpush2.msra.mxu0 0.0
    %1254 = vmatprep.subr.mxu0 0.0
    %1255 = vmatpush2.msra.mxu0 0.0
    %1256 = vmatprep.subr.mxu0 0.0
    %1257 = vmatpush2.msra.mxu0 0.0
    %1258 = vmatprep.subr.mxu0 0.0
    %1259 = vmatpush2.msra.mxu0 0.0
    %1260 = vmatprep.subr.mxu0 0.0
    %1261 = vmatpush2.msra.mxu0 0.0
    %1262 = vmatprep.subr.mxu0 0.0
    %1263 = vmatpush2.msra.mxu0 0.0
    %1264 = vmatprep.subr.mxu0 0.0
    %1265 = vmatpush2.msra.mxu0 0.0
    %1266 = vmatprep.subr.mxu0 0.0
    %1267 = vmatpush2.msra.mxu0 0.0
    %1268 = vmatprep.mubr.f32.mxu0 0.0
    %1269 = vmatmul.mubr.f32.gmra.mxu0 %v1190
    %v1270 = vpop.f32.mrf.mxu0
    %v1271 = vadd.f32 %v467, %v1270
    %v1272 = vpop.f32.mrf.mxu0
    %v1273 = vadd.f32 %v469, %v1272
    %1274 = vmatprep.mubr.f32.mxu0 0.0
    %1275 = vmatmul.mubr.f32.gmra.mxu0 %v1193
    %v1276 = vpop.f32.mrf.mxu0
    %v1277 = vadd.f32 %v473, %v1276
    %v1278 = vpop.f32.mrf.mxu0
    %v1279 = vadd.f32 %v475, %v1278
    %1280 = vmatprep.mubr.f32.mxu0 0.0
    %1281 = vmatmul.mubr.f32.gmra.mxu0 %v1196
    %v1282 = vpop.f32.mrf.mxu0
    %v1283 = vadd.f32 %v479, %v1282
    %v1284 = vpop.f32.mrf.mxu0
    %v1285 = vadd.f32 %v481, %v1284
    %1286 = vmatprep.mubr.f32.mxu0 0.0
    %1287 = vmatmul.mubr.f32.gmra.mxu0 %v1199
    %v1288 = vpop.f32.mrf.mxu0
    %v1289 = vadd.f32 %v485, %v1288
    %v1290 = vpop.f32.mrf.mxu0
    %v1291 = vadd.f32 %v487, %v1290
    %1292 = vmatprep.mubr.f32.mxu0 0.0
    %1293 = vmatmul.mubr.f32.gmra.mxu0 %v1202
    %v1294 = vpop.f32.mrf.mxu0
    %v1295 = vadd.f32 %v491, %v1294
    %v1296 = vpop.f32.mrf.mxu0
    %v1297 = vadd.f32 %v493, %v1296
    %1298 = vdwg.mxu0
    %v1299 = vstv %s1166
    %v1300 = vmul.f32 %v1299, %v1271
    %v1301 = vmul.f32 %v1299, %v1273
    %v1302 = vmul.f32 %v1299, %v1277
    %v1303 = vmul.f32 %v1299, %v1279
    %v1304 = vmul.f32 %v1299, %v1283
    %v1305 = vmul.f32 %v1299, %v1285
    %v1306 = vmul.f32 %v1299, %v1289
    %v1307 = vmul.f32 %v1299, %v1291
    %v1308 = vmul.f32 %v1299, %v1295
    %v1309 = vmul.f32 %v1299, %v1297
    %1311 = vset.pattern.permute.xlu0 0
    %1312 = vperm.xlu0 %1311, %v1184
    %v1313 = vpop.permute.xlu0 %1312
    %1316 = vset.pattern.permute.xlu0 0
    %1317 = vperm.xlu0 %1316, %v1185
    %v1318 = vpop.permute.xlu0 %1317
    %1321 = vset.pattern.permute.xlu0 0
    %1322 = vperm.xlu0 %1321, %v1186
    %v1323 = vpop.permute.xlu0 %1322
    %1326 = vset.pattern.permute.xlu0 0
    %1327 = vperm.xlu0 %1326, %v1187
    %v1328 = vpop.permute.xlu0 %1327
    %1331 = vset.pattern.permute.xlu0 0
    %1332 = vperm.xlu0 %1331, %v1188
    %v1333 = vpop.permute.xlu0 %1332
    %v1335 = vadd.f32 %v1300, %v1313
    %v1336 = vadd.f32 %v1301, %v1313
    %v1337 = vadd.f32 %v1302, %v1318
    %v1338 = vadd.f32 %v1303, %v1318
    %v1339 = vadd.f32 %v1304, %v1323
    %v1340 = vadd.f32 %v1305, %v1323
    %v1341 = vadd.f32 %v1306, %v1328
    %v1342 = vadd.f32 %v1307, %v1328
    %v1343 = vadd.f32 %v1308, %v1333
    %v1344 = vadd.f32 %v1309, %v1333
    %v1345 = vmul.f32 %v1335, 0.01
    %v1346 = vmul.f32 %v1336, 0.01
    %v1347 = vmul.f32 %v1337, 0.01
    %v1348 = vmul.f32 %v1338, 0.01
    %v1349 = vmul.f32 %v1339, 0.01
    %v1350 = vmul.f32 %v1340, 0.01
    %v1351 = vmul.f32 %v1341, 0.01
    %v1352 = vmul.f32 %v1342, 0.01
    %v1353 = vmul.f32 %v1343, 0.01
    %v1354 = vmul.f32 %v1344, 0.01
    %v1355 = vmax.f32 %v1335, %v1345
    %v1356 = vmax.f32 %v1336, %v1346
    %v1357 = vmax.f32 %v1337, %v1347
    %v1358 = vmax.f32 %v1338, %v1348
    %v1359 = vmax.f32 %v1339, %v1349
    %v1360 = vmax.f32 %v1340, %v1350
    %v1361 = vmax.f32 %v1341, %v1351
    %v1362 = vmax.f32 %v1342, %v1352
    %v1363 = vmax.f32 %v1343, %v1353
    %v1364 = vmax.f32 %v1344, %v1354
    %v1365 = vld [vmem:[%s13] sm:$0xff]
    %v1366 = vld [vmem:[%s13 + $0x8] sm:$0xff]
    %v1367 = vld [vmem:[%s13 + $0x10] sm:$0xff]
    %v1368 = vld [vmem:[%s13 + $0x18] sm:$0xff]
    %v1369 = vld [vmem:[%s13 + $0x20] sm:$0xff]
    %v1370 = vadd.f32 %v1355, %v1356
    %v1371 = vadd.f32 %v1370, %v1357
    %v1372 = vadd.f32 %v1371, %v1358
    %v1373 = vadd.f32 %v1372, %v1359
    %v1374 = vadd.f32 %v1373, %v1360
    %v1375 = vadd.f32 %v1374, %v1361
    %v1376 = vadd.f32 %v1375, %v1362
    %v1377 = vadd.f32 %v1376, %v1363
    %v1378 = vadd.f32 %v1377, %v1364
    %1379 = vadd.xlane.f32.xlu0 %v1378
    %v1380 = vpop.xlane.xlu0 %1379
    %v1381 = vrot.slane %v1380, 4
    %v1382 = vadd.f32 %v1380, %v1381
    %v1383 = vrot.slane %v1382, 2
    %v1384 = vadd.f32 %v1382, %v1383
    %v1385 = vrot.slane %v1384, 1
    %v1386 = vadd.f32 %v1384, %v1385
    %s1387 = vtos %v1386
    %s1388 = sadd.f32 %s1387, %s556
    %v1389 = vmul.f32 %v1355, %v1355
    %v1390 = vmul.f32 %v1356, %v1356
    %v1391 = vmul.f32 %v1357, %v1357
    %v1392 = vmul.f32 %v1358, %v1358
    %v1393 = vmul.f32 %v1359, %v1359
    %v1394 = vmul.f32 %v1360, %v1360
    %v1395 = vmul.f32 %v1361, %v1361
    %v1396 = vmul.f32 %v1362, %v1362
    %v1397 = vmul.f32 %v1363, %v1363
    %v1398 = vmul.f32 %v1364, %v1364
    %v1399 = vadd.f32 %v1389, %v1390
    %v1400 = vadd.f32 %v1399, %v1391
    %v1401 = vadd.f32 %v1400, %v1392
    %v1402 = vadd.f32 %v1401, %v1393
    %v1403 = vadd.f32 %v1402, %v1394
    %v1404 = vadd.f32 %v1403, %v1395
    %v1405 = vadd.f32 %v1404, %v1396
    %v1406 = vadd.f32 %v1405, %v1397
    %v1407 = vadd.f32 %v1406, %v1398
    %1408 = vadd.xlane.f32.xlu0 %v1407
    %v1409 = vpop.xlane.xlu0 %1408
    %v1410 = vrot.slane %v1409, 4
    %v1411 = vadd.f32 %v1409, %v1410
    %v1412 = vrot.slane %v1411, 2
    %v1413 = vadd.f32 %v1411, %v1412
    %v1414 = vrot.slane %v1413, 1
    %v1415 = vadd.f32 %v1413, %v1414
    %s1416 = vtos %v1415
    %s1417 = sadd.f32 %s1416, %s574
    %v1418 = vrcp.pop 13824.0
    %s1419 = vtos %v1418
    %s1420 = smul.f32 %s1388, %s1419
    %s1421 = smul.f32 %s1420, 13824.0
    %s1422 = smul.f32 %s1421, %s1420
    %s1423 = ssub.f32 %s1417, %s1422
    %v1424 = vrcp.pop 13823.0
    %s1425 = vtos %v1424
    %s1426 = smul.f32 %s1423, %s1425
    %v1427 = vstv %s1426
    %v1428 = vrsqrt.pop %v1427
    %s1429 = vtos %v1428
    %v1430 = vld [vmem:[%s15] sm:$0xff]
    %v1431 = vld [vmem:[%s15 + $0x8] sm:$0xff]
    %v1432 = vld [vmem:[%s15 + $0x10] sm:$0xff]
    %v1433 = vld [vmem:[%s15 + $0x18] sm:$0xff]
    %v1434 = vld [vmem:[%s15 + $0x20] sm:$0xff]
    %s1435 = smul.f32 %s1429, %s1420
    %v1436 = vld [vmem:[%s14] sm:$0xff]
    %v1437 = vld [vmem:[%s14 + $0x8] sm:$0xff]
    %v1438 = vld [vmem:[%s14 + $0x10] sm:$0xff]
    %v1439 = vld [vmem:[%s14 + $0x18] sm:$0xff]
    %v1440 = vld [vmem:[%s14 + $0x20] sm:$0xff]
    %v1441 = vstv %s1435
    %v1442 = vmul.f32 %v1441, %v1436
    %v1443 = vmul.f32 %v1441, %v1437
    %v1444 = vmul.f32 %v1441, %v1438
    %v1445 = vmul.f32 %v1441, %v1439
    %v1446 = vmul.f32 %v1441, %v1440
    %v1447 = vsub.f32 %v1430, %v1442
    %v1448 = vsub.f32 %v1431, %v1443
    %v1449 = vsub.f32 %v1432, %v1444
    %v1450 = vsub.f32 %v1433, %v1445
    %v1451 = vsub.f32 %v1434, %v1446
    %v1453 = vsel %vm662, %v1365, 0
    %v1456 = vsel %vm662, %v1366, 0
    %v1459 = vsel %vm662, %v1367, 0
    %v1462 = vsel %vm662, %v1368, 0
    %v1465 = vsel %vm662, %v1369, 0
    %1467 = vmatprep.subr.mxu0 0.0
    %1468 = vmatpush1.msra.mxu0 0.0
    %1469 = vmatprep.subr.mxu0 0.0
    %1470 = vmatpush1.msra.mxu0 0.0
    %1471 = vmatprep.subr.mxu0 0.0
    %1472 = vmatpush1.msra.mxu0 0.0
    %1473 = vmatprep.subr.mxu0 0.0
    %1474 = vmatpush1.msra.mxu0 0.0
    %1475 = vmatprep.subr.mxu0 0.0
    %1476 = vmatpush1.msra.mxu0 0.0
    %1477 = vmatprep.subr.mxu0 0.0
    %1478 = vmatpush1.msra.mxu0 0.0
    %1479 = vmatprep.subr.mxu0 0.0
    %1480 = vmatpush1.msra.mxu0 0.0
    %1481 = vmatprep.subr.mxu0 0.0
    %1482 = vmatpush1.msra.mxu0 0.0
    %1483 = vmatprep.subr.mxu0 0.0
    %1484 = vmatpush1.msra.mxu0 0.0
    %1485 = vmatprep.subr.mxu0 0.0
    %1486 = vmatpush1.msra.mxu0 0.0
    %1487 = vmatprep.subr.mxu0 0.0
    %1488 = vmatpush1.msra.mxu0 0.0
    %1489 = vmatprep.subr.mxu0 %v1364
    %1490 = vmatpush1.msra.mxu0 %v1363
    %1491 = vmatprep.subr.mxu0 %v1362
    %1492 = vmatpush1.msra.mxu0 %v1361
    %1493 = vmatprep.subr.mxu0 %v1360
    %1494 = vmatpush1.msra.mxu0 %v1359
    %1495 = vmatprep.subr.mxu0 %v1358
    %1496 = vmatpush1.msra.mxu0 %v1357
    %1497 = vmatprep.subr.mxu0 %v1356
    %1498 = vmatpush1.msra.mxu0 %v1355
    %1499 = vmatprep.subr.mxu0 0.0
    %1500 = vmatpush2.msra.mxu0 0.0
    %1501 = vmatprep.subr.mxu0 0.0
    %1502 = vmatpush2.msra.mxu0 0.0
    %1503 = vmatprep.subr.mxu0 0.0
    %1504 = vmatpush2.msra.mxu0 0.0
    %1505 = vmatprep.subr.mxu0 0.0
    %1506 = vmatpush2.msra.mxu0 0.0
    %1507 = vmatprep.subr.mxu0 0.0
    %1508 = vmatpush2.msra.mxu0 0.0
    %1509 = vmatprep.subr.mxu0 0.0
    %1510 = vmatpush2.msra.mxu0 0.0
    %1511 = vmatprep.subr.mxu0 0.0
    %1512 = vmatpush2.msra.mxu0 0.0
    %1513 = vmatprep.subr.mxu0 0.0
    %1514 = vmatpush2.msra.mxu0 0.0
    %1515 = vmatprep.subr.mxu0 0.0
    %1516 = vmatpush2.msra.mxu0 0.0
    %1517 = vmatprep.subr.mxu0 0.0
    %1518 = vmatpush2.msra.mxu0 0.0
    %1519 = vmatprep.subr.mxu0 0.0
    %1520 = vmatpush2.msra.mxu0 0.0
    %1521 = vmatprep.subr.mxu0 0.0
    %1522 = vmatpush2.msra.mxu0 0.0
    %1523 = vmatprep.subr.mxu0 0.0
    %1524 = vmatpush2.msra.mxu0 0.0
    %1525 = vmatprep.subr.mxu0 0.0
    %1526 = vmatpush2.msra.mxu0 0.0
    %1527 = vmatprep.subr.mxu0 0.0
    %1528 = vmatpush2.msra.mxu0 0.0
    %1529 = vmatprep.subr.mxu0 0.0
    %1530 = vmatpush2.msra.mxu0 0.0
    %1531 = vmatprep.mubr.f32.mxu0 0.0
    %1532 = vmatmul.mubr.f32.gmra.mxu0 %v1453
    %v1533 = vpop.f32.mrf.mxu0
    %v1534 = vadd.f32 %v497, %v1533
    %v1535 = vpop.f32.mrf.mxu0
    %v1536 = vadd.f32 %v499, %v1535
    %1537 = vmatprep.mubr.f32.mxu0 0.0
    %1538 = vmatmul.mubr.f32.gmra.mxu0 %v1456
    %v1539 = vpop.f32.mrf.mxu0
    %v1540 = vadd.f32 %v503, %v1539
    %v1541 = vpop.f32.mrf.mxu0
    %v1542 = vadd.f32 %v505, %v1541
    %1543 = vmatprep.mubr.f32.mxu0 0.0
    %1544 = vmatmul.mubr.f32.gmra.mxu0 %v1459
    %v1545 = vpop.f32.mrf.mxu0
    %v1546 = vadd.f32 %v509, %v1545
    %v1547 = vpop.f32.mrf.mxu0
    %v1548 = vadd.f32 %v511, %v1547
    %1549 = vmatprep.mubr.f32.mxu0 0.0
    %1550 = vmatmul.mubr.f32.gmra.mxu0 %v1462
    %v1551 = vpop.f32.mrf.mxu0
    %v1552 = vadd.f32 %v515, %v1551
    %v1553 = vpop.f32.mrf.mxu0
    %v1554 = vadd.f32 %v517, %v1553
    %1555 = vmatprep.mubr.f32.mxu0 0.0
    %1556 = vmatmul.mubr.f32.gmra.mxu0 %v1465
    %v1557 = vpop.f32.mrf.mxu0
    %v1558 = vadd.f32 %v521, %v1557
    %v1559 = vpop.f32.mrf.mxu0
    %v1560 = vadd.f32 %v523, %v1559
    %1561 = vdwg.mxu0
    %v1562 = vstv %s1429
    %v1563 = vmul.f32 %v1562, %v1534
    %v1564 = vmul.f32 %v1562, %v1536
    %v1565 = vmul.f32 %v1562, %v1540
    %v1566 = vmul.f32 %v1562, %v1542
    %v1567 = vmul.f32 %v1562, %v1546
    %v1568 = vmul.f32 %v1562, %v1548
    %v1569 = vmul.f32 %v1562, %v1552
    %v1570 = vmul.f32 %v1562, %v1554
    %v1571 = vmul.f32 %v1562, %v1558
    %v1572 = vmul.f32 %v1562, %v1560
    %1574 = vset.pattern.permute.xlu0 0
    %1575 = vperm.xlu0 %1574, %v1447
    %v1576 = vpop.permute.xlu0 %1575
    %1579 = vset.pattern.permute.xlu0 0
    %1580 = vperm.xlu0 %1579, %v1448
    %v1581 = vpop.permute.xlu0 %1580
    %1584 = vset.pattern.permute.xlu0 0
    %1585 = vperm.xlu0 %1584, %v1449
    %v1586 = vpop.permute.xlu0 %1585
    %1589 = vset.pattern.permute.xlu0 0
    %1590 = vperm.xlu0 %1589, %v1450
    %v1591 = vpop.permute.xlu0 %1590
    %1594 = vset.pattern.permute.xlu0 0
    %1595 = vperm.xlu0 %1594, %v1451
    %v1596 = vpop.permute.xlu0 %1595
    %v1598 = vadd.f32 %v1563, %v1576
    %v1599 = vadd.f32 %v1564, %v1576
    %v1600 = vadd.f32 %v1565, %v1581
    %v1601 = vadd.f32 %v1566, %v1581
    %v1602 = vadd.f32 %v1567, %v1586
    %v1603 = vadd.f32 %v1568, %v1586
    %v1604 = vadd.f32 %v1569, %v1591
    %v1605 = vadd.f32 %v1570, %v1591
    %v1606 = vadd.f32 %v1571, %v1596
    %v1607 = vadd.f32 %v1572, %v1596
    %v1608 = vmul.f32 %v1598, 0.01
    %v1609 = vmul.f32 %v1599, 0.01
    %v1610 = vmul.f32 %v1600, 0.01
    %v1611 = vmul.f32 %v1601, 0.01
    %v1612 = vmul.f32 %v1602, 0.01
    %v1613 = vmul.f32 %v1603, 0.01
    %v1614 = vmul.f32 %v1604, 0.01
    %v1615 = vmul.f32 %v1605, 0.01
    %v1616 = vmul.f32 %v1606, 0.01
    %v1617 = vmul.f32 %v1607, 0.01
    %v1618 = vmax.f32 %v1598, %v1608
    %v1619 = vmax.f32 %v1599, %v1609
    %v1620 = vmax.f32 %v1600, %v1610
    %v1621 = vmax.f32 %v1601, %v1611
    %v1622 = vmax.f32 %v1602, %v1612
    %v1623 = vmax.f32 %v1603, %v1613
    %v1624 = vmax.f32 %v1604, %v1614
    %v1625 = vmax.f32 %v1605, %v1615
    %v1626 = vmax.f32 %v1606, %v1616
    %v1627 = vmax.f32 %v1607, %v1617
    %v1628 = vld [vmem:[%s16] sm:$0xff]
    %v1629 = vld [vmem:[%s16 + $0x8] sm:$0xff]
    %v1630 = vld [vmem:[%s16 + $0x10] sm:$0xf]
    %v1631 = vadd.f32 %v1618, %v1619
    %v1632 = vadd.f32 %v1631, %v1620
    %v1633 = vadd.f32 %v1632, %v1621
    %v1634 = vadd.f32 %v1633, %v1622
    %v1635 = vadd.f32 %v1634, %v1623
    %v1636 = vadd.f32 %v1635, %v1624
    %v1637 = vadd.f32 %v1636, %v1625
    %v1638 = vadd.f32 %v1637, %v1626
    %v1639 = vadd.f32 %v1638, %v1627
    %1640 = vadd.xlane.f32.xlu0 %v1639
    %v1641 = vpop.xlane.xlu0 %1640
    %v1642 = vrot.slane %v1641, 4
    %v1643 = vadd.f32 %v1641, %v1642
    %v1644 = vrot.slane %v1643, 2
    %v1645 = vadd.f32 %v1643, %v1644
    %v1646 = vrot.slane %v1645, 1
    %v1647 = vadd.f32 %v1645, %v1646
    %s1648 = vtos %v1647
    %s1649 = sadd.f32 %s1648, %s556
    %v1650 = vmul.f32 %v1618, %v1618
    %v1651 = vmul.f32 %v1619, %v1619
    %v1652 = vmul.f32 %v1620, %v1620
    %v1653 = vmul.f32 %v1621, %v1621
    %v1654 = vmul.f32 %v1622, %v1622
    %v1655 = vmul.f32 %v1623, %v1623
    %v1656 = vmul.f32 %v1624, %v1624
    %v1657 = vmul.f32 %v1625, %v1625
    %v1658 = vmul.f32 %v1626, %v1626
    %v1659 = vmul.f32 %v1627, %v1627
    %v1660 = vadd.f32 %v1650, %v1651
    %v1661 = vadd.f32 %v1660, %v1652
    %v1662 = vadd.f32 %v1661, %v1653
    %v1663 = vadd.f32 %v1662, %v1654
    %v1664 = vadd.f32 %v1663, %v1655
    %v1665 = vadd.f32 %v1664, %v1656
    %v1666 = vadd.f32 %v1665, %v1657
    %v1667 = vadd.f32 %v1666, %v1658
    %v1668 = vadd.f32 %v1667, %v1659
    %1669 = vadd.xlane.f32.xlu0 %v1668
    %v1670 = vpop.xlane.xlu0 %1669
    %v1671 = vrot.slane %v1670, 4
    %v1672 = vadd.f32 %v1670, %v1671
    %v1673 = vrot.slane %v1672, 2
    %v1674 = vadd.f32 %v1672, %v1673
    %v1675 = vrot.slane %v1674, 1
    %v1676 = vadd.f32 %v1674, %v1675
    %s1677 = vtos %v1676
    %s1678 = sadd.f32 %s1677, %s574
    %v1679 = vrcp.pop 13824.0
    %s1680 = vtos %v1679
    %s1681 = smul.f32 %s1649, %s1680
    %s1682 = smul.f32 %s1681, 13824.0
    %s1683 = smul.f32 %s1682, %s1681
    %s1684 = ssub.f32 %s1678, %s1683
    %v1685 = vrcp.pop 13823.0
    %s1686 = vtos %v1685
    %s1687 = smul.f32 %s1684, %s1686
    %v1688 = vstv %s1687
    %v1689 = vrsqrt.pop %v1688
    %s1690 = vtos %v1689
    %v1691 = vld [vmem:[%s18] sm:$0xff]
    %v1692 = vld [vmem:[%s18 + $0x8] sm:$0xff]
    %v1693 = vld [vmem:[%s18 + $0x10] sm:$0xf]
    %s1694 = smul.f32 %s1690, %s1681
    %v1695 = vld [vmem:[%s17] sm:$0xff]
    %v1696 = vld [vmem:[%s17 + $0x8] sm:$0xff]
    %v1697 = vld [vmem:[%s17 + $0x10] sm:$0xf]
    %v1698 = vstv %s1694
    %v1699 = vmul.f32 %v1698, %v1695
    %v1700 = vmul.f32 %v1698, %v1696
    %v1701 = vmul.f32 %v1698, %v1697
    %v1702 = vsub.f32 %v1691, %v1699
    %v1703 = vsub.f32 %v1692, %v1700
    %v1704 = vsub.f32 %v1693, %v1701
    %v1706 = vsel %vm662, %v1628, 0
    %v1709 = vsel %vm662, %v1629, 0
    %v1712 = vsel %vm662, %v1630, 0
    %1714 = vmatprep.subr.mxu0 0.0
    %1715 = vmatpush1.msra.mxu0 0.0
    %1716 = vmatprep.subr.mxu0 0.0
    %1717 = vmatpush1.msra.mxu0 0.0
    %1718 = vmatprep.subr.mxu0 0.0
    %1719 = vmatpush1.msra.mxu0 0.0
    %1720 = vmatprep.subr.mxu0 0.0
    %1721 = vmatpush1.msra.mxu0 0.0
    %1722 = vmatprep.subr.mxu0 0.0
    %1723 = vmatpush1.msra.mxu0 0.0
    %1724 = vmatprep.subr.mxu0 0.0
    %1725 = vmatpush1.msra.mxu0 0.0
    %1726 = vmatprep.subr.mxu0 0.0
    %1727 = vmatpush1.msra.mxu0 0.0
    %1728 = vmatprep.subr.mxu0 0.0
    %1729 = vmatpush1.msra.mxu0 0.0
    %1730 = vmatprep.subr.mxu0 0.0
    %1731 = vmatpush1.msra.mxu0 0.0
    %1732 = vmatprep.subr.mxu0 0.0
    %1733 = vmatpush1.msra.mxu0 0.0
    %1734 = vmatprep.subr.mxu0 0.0
    %1735 = vmatpush1.msra.mxu0 0.0
    %1736 = vmatprep.subr.mxu0 %v1627
    %1737 = vmatpush1.msra.mxu0 %v1626
    %1738 = vmatprep.subr.mxu0 %v1625
    %1739 = vmatpush1.msra.mxu0 %v1624
    %1740 = vmatprep.subr.mxu0 %v1623
    %1741 = vmatpush1.msra.mxu0 %v1622
    %1742 = vmatprep.subr.mxu0 %v1621
    %1743 = vmatpush1.msra.mxu0 %v1620
    %1744 = vmatprep.subr.mxu0 %v1619
    %1745 = vmatpush1.msra.mxu0 %v1618
    %1746 = vmatprep.subr.mxu0 0.0
    %1747 = vmatpush2.msra.mxu0 0.0
    %1748 = vmatprep.subr.mxu0 0.0
    %1749 = vmatpush2.msra.mxu0 0.0
    %1750 = vmatprep.subr.mxu0 0.0
    %1751 = vmatpush2.msra.mxu0 0.0
    %1752 = vmatprep.subr.mxu0 0.0
    %1753 = vmatpush2.msra.mxu0 0.0
    %1754 = vmatprep.subr.mxu0 0.0
    %1755 = vmatpush2.msra.mxu0 0.0
    %1756 = vmatprep.subr.mxu0 0.0
    %1757 = vmatpush2.msra.mxu0 0.0
    %1758 = vmatprep.subr.mxu0 0.0
    %1759 = vmatpush2.msra.mxu0 0.0
    %1760 = vmatprep.subr.mxu0 0.0
    %1761 = vmatpush2.msra.mxu0 0.0
    %1762 = vmatprep.subr.mxu0 0.0
    %1763 = vmatpush2.msra.mxu0 0.0
    %1764 = vmatprep.subr.mxu0 0.0
    %1765 = vmatpush2.msra.mxu0 0.0
    %1766 = vmatprep.subr.mxu0 0.0
    %1767 = vmatpush2.msra.mxu0 0.0
    %1768 = vmatprep.subr.mxu0 0.0
    %1769 = vmatpush2.msra.mxu0 0.0
    %1770 = vmatprep.subr.mxu0 0.0
    %1771 = vmatpush2.msra.mxu0 0.0
    %1772 = vmatprep.subr.mxu0 0.0
    %1773 = vmatpush2.msra.mxu0 0.0
    %1774 = vmatprep.subr.mxu0 0.0
    %1775 = vmatpush2.msra.mxu0 0.0
    %1776 = vmatprep.subr.mxu0 0.0
    %1777 = vmatpush2.msra.mxu0 0.0
    %1778 = vmatprep.mubr.f32.mxu0 0.0
    %1779 = vmatmul.mubr.f32.gmra.mxu0 %v1706
    %v1780 = vpop.f32.mrf.mxu0
    %v1781 = vadd.f32 %v527, %v1780
    %v1782 = vpop.f32.mrf.mxu0
    %v1783 = vadd.f32 %v529, %v1782
    %1784 = vmatprep.mubr.f32.mxu0 0.0
    %1785 = vmatmul.mubr.f32.gmra.mxu0 %v1709
    %v1786 = vpop.f32.mrf.mxu0
    %v1787 = vadd.f32 %v533, %v1786
    %v1788 = vpop.f32.mrf.mxu0
    %v1789 = vadd.f32 %v535, %v1788
    %1790 = vmatprep.mubr.f32.mxu0 0.0
    %1791 = vmatmul.mubr.f32.gmra.mxu0 %v1712
    %v1792 = vpop.f32.mrf.mxu0
    %v1793 = vadd.f32 %v539, %v1792
    %v1794 = vpop.f32.mrf.mxu0
    %v1795 = vadd.f32 %v541, %v1794
    %1796 = vdwg.mxu0
    %v1797 = vstv %s1690
    %v1798 = vmul.f32 %v1797, %v1781
    %v1799 = vmul.f32 %v1797, %v1783
    %v1800 = vmul.f32 %v1797, %v1787
    %v1801 = vmul.f32 %v1797, %v1789
    %v1802 = vmul.f32 %v1797, %v1793
    %v1803 = vmul.f32 %v1797, %v1795
    %1805 = vset.pattern.permute.xlu0 0
    %1806 = vperm.xlu0 %1805, %v1702
    %v1807 = vpop.permute.xlu0 %1806
    %1810 = vset.pattern.permute.xlu0 0
    %1811 = vperm.xlu0 %1810, %v1703
    %v1812 = vpop.permute.xlu0 %1811
    %1815 = vset.pattern.permute.xlu0 0
    %1816 = vperm.xlu0 %1815, %v1704
    %v1817 = vpop.permute.xlu0 %1816
    %v1819 = vadd.f32 %v1798, %v1807
    %v1820 = vadd.f32 %v1799, %v1807
    %v1821 = vadd.f32 %v1800, %v1812
    %v1822 = vadd.f32 %v1801, %v1812
    %v1823 = vadd.f32 %v1802, %v1817
    %v1824 = vadd.f32 %v1803, %v1817
    %v1825 = vmul.f32 %v1819, 0.01
    %v1826 = vmul.f32 %v1820, 0.01
    %v1827 = vmul.f32 %v1821, 0.01
    %v1828 = vmul.f32 %v1822, 0.01
    %v1829 = vmul.f32 %v1823, 0.01
    %v1830 = vmul.f32 %v1824, 0.01
    %v1831 = vmax.f32 %v1819, %v1825
    %v1832 = vmax.f32 %v1820, %v1826
    %v1833 = vmax.f32 %v1821, %v1827
    %v1834 = vmax.f32 %v1822, %v1828
    %v1835 = vmax.f32 %v1823, %v1829
    %v1836 = vmax.f32 %v1824, %v1830
    %v1837 = vld [vmem:[%s19] sm:$0x1]
    %v1838 = vld [vmem:[#allocation2] sm:$0x1]
    %1840 = vset.pattern.permute.xlu0 0
    %1841 = vperm.xlu0 %1840, %v1838
    %v1842 = vpop.permute.xlu0 %1841
    %v1844 = vlaneseq
    %v1845 = vshrl.u32 %v1844, 7
    %v1846 = vsub.s32 0, %v1845
    %v1847 = vrot.slane %v1842, %v1846
    %vm1848 = vcmask 162816
    %v1850 = vsel %vm1848, %v1837, 0
    %vm1852 = vcmask 1043456
    %v1854 = vsel %vm1852, %v1835, 0
    %v1857 = vsel %vm1852, %v1836, 0
    %1859 = vmatprep.subr.mxu0 0.0
    %1860 = vmatpush1.msra.mxu0 0.0
    %1861 = vmatprep.subr.mxu0 0.0
    %1862 = vmatpush1.msra.mxu0 0.0
    %1863 = vmatprep.subr.mxu0 0.0
    %1864 = vmatpush1.msra.mxu0 0.0
    %1865 = vmatprep.subr.mxu0 0.0
    %1866 = vmatpush1.msra.mxu0 0.0
    %1867 = vmatprep.subr.mxu0 0.0
    %1868 = vmatpush1.msra.mxu0 0.0
    %1869 = vmatprep.subr.mxu0 0.0
    %1870 = vmatpush1.msra.mxu0 0.0
    %1871 = vmatprep.subr.mxu0 0.0
    %1872 = vmatpush1.msra.mxu0 0.0
    %1873 = vmatprep.subr.mxu0 0.0
    %1874 = vmatpush1.msra.mxu0 0.0
    %1875 = vmatprep.subr.mxu0 0.0
    %1876 = vmatpush1.msra.mxu0 0.0
    %1877 = vmatprep.subr.mxu0 0.0
    %1878 = vmatpush1.msra.mxu0 0.0
    %1879 = vmatprep.subr.mxu0 0.0
    %1880 = vmatpush1.msra.mxu0 0.0
    %1881 = vmatprep.subr.mxu0 0.0
    %1882 = vmatpush1.msra.mxu0 0.0
    %1883 = vmatprep.subr.mxu0 0.0
    %1884 = vmatpush1.msra.mxu0 0.0
    %1885 = vmatprep.subr.mxu0 %v1857
    %1886 = vmatpush1.msra.mxu0 %v1854
    %1887 = vmatprep.subr.mxu0 %v1834
    %1888 = vmatpush1.msra.mxu0 %v1833
    %1889 = vmatprep.subr.mxu0 %v1832
    %1890 = vmatpush1.msra.mxu0 %v1831
    %1891 = vmatprep.subr.mxu0 0.0
    %1892 = vmatpush2.msra.mxu0 0.0
    %1893 = vmatprep.subr.mxu0 0.0
    %1894 = vmatpush2.msra.mxu0 0.0
    %1895 = vmatprep.subr.mxu0 0.0
    %1896 = vmatpush2.msra.mxu0 0.0
    %1897 = vmatprep.subr.mxu0 0.0
    %1898 = vmatpush2.msra.mxu0 0.0
    %1899 = vmatprep.subr.mxu0 0.0
    %1900 = vmatpush2.msra.mxu0 0.0
    %1901 = vmatprep.subr.mxu0 0.0
    %1902 = vmatpush2.msra.mxu0 0.0
    %1903 = vmatprep.subr.mxu0 0.0
    %1904 = vmatpush2.msra.mxu0 0.0
    %1905 = vmatprep.subr.mxu0 0.0
    %1906 = vmatpush2.msra.mxu0 0.0
    %1907 = vmatprep.subr.mxu0 0.0
    %1908 = vmatpush2.msra.mxu0 0.0
    %1909 = vmatprep.subr.mxu0 0.0
    %1910 = vmatpush2.msra.mxu0 0.0
    %1911 = vmatprep.subr.mxu0 0.0
    %1912 = vmatpush2.msra.mxu0 0.0
    %1913 = vmatprep.subr.mxu0 0.0
    %1914 = vmatpush2.msra.mxu0 0.0
    %1915 = vmatprep.subr.mxu0 0.0
    %1916 = vmatpush2.msra.mxu0 0.0
    %1917 = vmatprep.subr.mxu0 0.0
    %1918 = vmatpush2.msra.mxu0 0.0
    %1919 = vmatprep.subr.mxu0 0.0
    %1920 = vmatpush2.msra.mxu0 0.0
    %1921 = vmatprep.subr.mxu0 0.0
    %1922 = vmatpush2.msra.mxu0 0.0
    %1923 = vmatprep.mubr.f32.mxu0 0.0
    %1924 = vmatmul.mubr.f32.gmra.mxu0 %v1850
    %v1925 = vpop.f32.mrf.mxu0
    %v1926 = vadd.f32 %v1847, %v1925
    %v1927 = vpop.f32.mrf.mxu0
    %v1928 = vadd.f32 %v1847, %v1927
    %1929 = vdwg.mxu0
    %v1932 = vcombine.low %v1926, %v1928
    %v1934 = vunpack.c.l.s4 1966171168
    %v1935 = vunpack.c.0.s8 %v1934
    %v1936 = vlaneseq
    %v1937 = vshrl.u32 %v1936, 7
    %v1938 = vsub.s32 %v1935, %v1937
    %v1939 = vrot.slane %v1932, %v1938
    %v1941 = vunpack.c.l.s4 1966171168
    %v1942 = vunpack.c.0.s8 %v1941
    %v1943 = vlaneseq
    %v1944 = vshrl.u32 %v1943, 7
    %v1945 = vsub.s32 %v1942, %v1944
    %v1946 = vrot.slane %v1939, %v1945
    %v1948 = vlaneseq
    %vm1949 = vcmp.ge.s32.totalorder %v1948, 0
    %vm1950 = vcmp.lt.s32.totalorder %v1948, 256
    %vm1951 = vmand %vm1949, %vm1950
    %1952 = vst.msk [vmem:[#allocation3] sm:$0x3] %vm1951, %v1946
    // Predicated region
    $region86: #{tpu_custom_call.1} parent=1 // pred_check
      _
    $region87: #{tpu_custom_call.1} parent=1 // pred_check_branch
      %1954 = sbr.rel (0) target = $region89
    $region88: #{tpu_custom_call.1} parent=1 // pred_region
      %s1956 = ssub.s32 32, 32
      %1957 = vsyncadd [#allocation4], %s1956
      %s1959 = sshll.u32 [#allocation3], 4
      %s1960 = int_to_ptr.vmem [resolvable:$true] %s1959
      %1962 = dma.vmem_to_hbm [thread:$0]  %s1960, 32, %s21, [#allocation4]
    $region89: #{tpu_custom_call.1} parent=1 // pred_fallthru
      _
    // Predicated region
    $region90: #{tpu_custom_call.1} parent=1 // pred_check
      _
    $region91: #{tpu_custom_call.1} parent=1 // pred_check_branch
      %1964 = sbr.rel (0) target = $region93
    $region92: #{tpu_custom_call.1} parent=1 // pred_region
      %1965 = dma.done [#allocation4], 32
    $region93: #{tpu_custom_call.1} parent=1 // pred_fallthru
      _
    %1966 = vsyncpa [#allocation4], 1

</llo_original>
